<compile_context>
chip_gen: v7x
topology: tpu7x:2x2x1
jax: 0.10.0
libtpu: 0.0.40
codegen_flags: <defaults>
</compile_context>

<pallas_src>
import jax
import jax.numpy as jnp
from jax.experimental import pallas as pl
from jax.experimental.pallas import tpu as pltpu

# ----------------------------- configuration -------------------------------
B, CIN, HS, WS = 2, 4, 16, 16          # input NCHW
CANN = 8                                # ann conv output channels
T = 4                                   # SNN time steps
F = CANN * HS * WS                      # flattened feature dim (2048), (h, w, c) order
HID = 128                               # SNN hidden size
NUM_CLASSES = 10
TAU = 0.5                               # LIF membrane decay
V_TH = 1.0                              # LIF firing threshold
K_IM2COL = CIN * 9                      # 36
K_PAD = 128                             # im2col K zero-padded to 128 (tile aligned)


# ------------------------------ Pallas kernels -----------------------------
def _conv_mm_kernel(p_ref, w_ref, b_ref, o_ref):
    """ann: im2col patches @ weight + bias, ReLU.  p:[BHW,Kpad] w:[Kpad,Cann]."""
    acc = jnp.dot(p_ref[...], w_ref[...], preferred_element_type=jnp.float32)
    o_ref[...] = jnp.maximum(acc + b_ref[...], 0.0)


def _a2s_fused_kernel(a_ref, sw_ref, sb_ref, ew_ref, eb_ref, o_ref,
                      spk_ref, cur_ref):
    """Fused a2shu + multi-step LIF SNN + encode.

    a_ref  : [B, F]   f32   analog features (per-batch, (h, w, c) order)
    sw_ref : [F, HID] bf16  SNN linear weight (rows already in (h, w, c) order)
    sb_ref : [1, HID] f32   SNN bias
    ew_ref : [HID, NC] f32  readout weight,  eb_ref: [1, NC] f32 readout bias
    o_ref  : [B, NC]  f32   logits
    spk_ref: VMEM scratch [T*B, F] bf16 — spike train for all T steps
    cur_ref: VMEM scratch [T*B, HID] f32 — batched synaptic currents
    """
    # --- a2shu: rate-encode all T steps into the VMEM spike scratch -------------
    a = jnp.clip(a_ref[...], 0.0, 1.0)                         # [B, F] f32
    for t in range(T):                                         # T=4, static unroll
        thr = (t + 0.5) / T                                    # static Python float
        # B=2 rows at even sublane offset -> exactly one packed bf16 sublane store
        spk_ref[pl.ds(t * B, B), :] = (a >= thr).astype(jnp.bfloat16)

    # --- snn: one batched MXU matmul for all T*B rows (bf16 operands, f32 acc) --
    cur_ref[...] = jnp.dot(spk_ref[...], sw_ref[...],
                           preferred_element_type=jnp.float32) + sb_ref[...]

    # --- LIF recurrence over T: tiny unrolled VPU loop, state lives in vregs ----
    v = jnp.zeros((B, HID), jnp.float32)
    s_sum = jnp.zeros((B, HID), jnp.float32)
    for t in range(T):
        i_t = cur_ref[pl.ds(t * B, B), :]                      # currents for step t
        v = v * TAU + i_t
        spk = (v >= V_TH).astype(jnp.float32)
        v = v - spk * V_TH                                     # soft reset
        s_sum = s_sum + spk
    # TODO(synk): reference module injects its SNN; a tau-decay LIF with soft reset
    # is the concrete choice here (same dynamics as the previous version).

    # --- encode: temporal mean of hidden spikes + linear readout ----------------
    mean = s_sum * (1.0 / T)
    o_ref[...] = jnp.dot(mean, ew_ref[...],
                         preferred_element_type=jnp.float32) + eb_ref[...]


# ------------------------------ wrappers ------------------------------------
def _full_spec(shape):
    # single-block spec covering the whole array (grid=(1,))
    return pl.BlockSpec(shape, lambda i: (0,) * len(shape))


def ann_conv(patches, w_mat, bias):
    bhw, k = patches.shape
    cann = w_mat.shape[1]
    return pl.pallas_call(
        _conv_mm_kernel,
        out_shape=jax.ShapeDtypeStruct((bhw, cann), jnp.float32),
        grid=(1,),
        in_specs=[_full_spec((bhw, k)),
                  _full_spec((k, cann)),
                  _full_spec((1, cann))],
        out_specs=_full_spec((bhw, cann)),
    )(patches, w_mat, bias)


def a2s_snn_encode(feat, snn_w, snn_b, enc_w, enc_b):
    b, f = feat.shape
    hid = snn_w.shape[1]
    nc = enc_w.shape[1]
    return pl.pallas_call(
        _a2s_fused_kernel,
        out_shape=jax.ShapeDtypeStruct((b, nc), jnp.float32),
        grid=(1,),
        in_specs=[_full_spec((b, f)),
                  _full_spec((f, hid)),
                  _full_spec((1, hid)),
                  _full_spec((hid, nc)),
                  _full_spec((1, nc))],
        out_specs=_full_spec((b, nc)),
        scratch_shapes=[pltpu.VMEM((T * B, f), jnp.bfloat16),
                        pltpu.VMEM((T * B, hid), jnp.float32)],
    )(feat, snn_w, snn_b, enc_w, enc_b)


# ------------------------------ glue (plain JAX) ----------------------------
def im2col_3x3(x):
    """x: NCHW -> patches [B*H*W, K_PAD]; column order (kh, kw, cin), matching the
    conv weight built in make_params().  Only a 4 KB NHWC transpose is needed; the
    tap stack collapses with a free row-major reshape."""
    b, c, h, w = x.shape
    xn = x.transpose(0, 2, 3, 1)                              # NHWC, 4 KB transpose
    xp = jnp.pad(xn, ((0, 0), (1, 1), (1, 1), (0, 0)))
    taps = [xp[:, i:i + h, j:j + w, :] for i in range(3) for j in range(3)]
    p = jnp.stack(taps, axis=3)                               # [B, H, W, 9, C]
    p = p.reshape(b * h * w, 9 * c)                           # [BHW, 36], free reshape
    return jnp.pad(p, ((0, 0), (0, K_PAD - 9 * c)))           # [BHW, 128]


@jax.jit
def a2s_forward(x, params):
    # ann (Pallas conv-as-matmul)
    patches = im2col_3x3(x)                                             # [B*H*W, 128]
    conv_flat = ann_conv(patches, params["conv_w"], params["conv_b"])   # [B*H*W, CANN]
    # free row-major reshape: per-batch features in (h, w, c) order; snn_w rows are
    # pre-permuted to the same order in make_params(), so no transpose is needed.
    feat = conv_flat.reshape(B, F)                                      # [B, F]
    # a2shu + snn.multi_step_forward + encode (single fused Pallas kernel); the
    # [T*B, F] spike train is built inside the kernel and never touches HBM.
    return a2s_snn_encode(feat, params["snn_w"], params["snn_b"],
                          params["enc_w"], params["enc_b"])             # [B, NUM_CLASSES]


def make_params():
    k = jax.random.PRNGKey(0)
    k1, k2, k3 = jax.random.split(k, 3)
    # torch Conv2d weight [Cout, Cin, 3, 3] -> matmul weight with rows in the same
    # (kh, kw, cin) order as the im2col columns, K zero-padded to 128.
    conv_w4 = jax.random.normal(k1, (CANN, CIN, 3, 3), jnp.float32) * 0.1
    conv_w = conv_w4.transpose(2, 3, 1, 0).reshape(K_IM2COL, CANN)   # [36, CANN]
    conv_w = jnp.pad(conv_w, ((0, K_PAD - K_IM2COL), (0, 0)))        # [128, CANN]
    conv_b = jnp.zeros((1, CANN), jnp.float32)
    # torch Linear(F, HID): generate rows in NCHW-flatten (c, h, w) order, then
    # permute once to the (h, w, c) order the kernel's feature layout uses.
    snn_w_chw = jax.random.normal(k2, (F, HID), jnp.float32) * (1.0 / jnp.sqrt(F))
    perm = jnp.arange(F).reshape(CANN, HS, WS).transpose(1, 2, 0).reshape(F)
    snn_w = snn_w_chw[perm].astype(jnp.bfloat16)                     # bf16 MXU operand
    snn_b = jnp.zeros((1, HID), jnp.float32)
    enc_w = jax.random.normal(k3, (HID, NUM_CLASSES), jnp.float32) * (1.0 / jnp.sqrt(HID))
    enc_b = jnp.zeros((1, NUM_CLASSES), jnp.float32)
    return dict(conv_w=conv_w, conv_b=conv_b,
                snn_w=snn_w, snn_b=snn_b,
                enc_w=enc_w, enc_b=enc_b)


if __name__ == "__main__":
    key = jax.random.PRNGKey(0)
    x = jax.random.normal(key, (B, CIN, HS, WS), jnp.float32)  # layout: NCHW
    params = make_params()
    out = a2s_forward(x, params)
    out = jax.block_until_ready(out)
    assert out.shape == (B, NUM_CLASSES) and out.dtype == jnp.float32
    assert bool(jnp.all(jnp.isfinite(out)))
    # TODO(synk): the reference module's ann/a2shu/snn/encode are injected at
    # construction time; concrete conv+rate-encoder+LIF+readout chosen here.
    print("KERNEL_OK")
</pallas_src>

<mosaic_0001>
module attributes {stable_mosaic.version = 11 : i64} {
  func.func @_conv_mm_kernel(%arg0: i32, %arg1: memref<512x128xf32, #tpu.memory_space<vmem>>, %arg2: memref<128x8xf32, #tpu.memory_space<vmem>>, %arg3: memref<1x8xf32, #tpu.memory_space<vmem>>, %arg4: memref<512x8xf32, #tpu.memory_space<vmem>>) attributes {dimension_semantics = [#tpu.dimension_semantics<arbitrary>], iteration_bounds = array<i64: 1>, scalar_prefetch = 0 : i64, scratch_operands = 0 : i64, tpu.core_type = #tpu.core_type<tc>, window_params = [{pipeline_mode = #tpu.pipeline_mode<synchronous>, transform_indices = @transform_0, window_bounds = array<i64: 512, 128>}, {pipeline_mode = #tpu.pipeline_mode<synchronous>, transform_indices = @transform_1, window_bounds = array<i64: 128, 8>}, {pipeline_mode = #tpu.pipeline_mode<synchronous>, transform_indices = @transform_2, window_bounds = array<i64: 1, 8>}, {pipeline_mode = #tpu.pipeline_mode<synchronous>, transform_indices = @transform_3, window_bounds = array<i64: 512, 8>}]} {
    %c0 = arith.constant 0 : index
    %c0_0 = arith.constant 0 : index
    %0 = vector.load %arg1[%c0, %c0_0] : memref<512x128xf32, #tpu.memory_space<vmem>>, vector<512x128xf32>
    %c0_1 = arith.constant 0 : index
    %c0_2 = arith.constant 0 : index
    %1 = vector.load %arg2[%c0_1, %c0_2] : memref<128x8xf32, #tpu.memory_space<vmem>>, vector<128x8xf32>
    %cst = arith.constant dense<0.000000e+00> : vector<512x8xf32>
    %2 = tpu.matmul %0, %1, %cst {dimension_numbers = #tpu.dot_dimension_numbers<[1], [0], [0], [1], [0, 0, 1, 1], [], []>} : vector<512x128xf32>, vector<128x8xf32>, vector<512x8xf32> -> vector<512x8xf32>
    %c0_3 = arith.constant 0 : index
    %c0_4 = arith.constant 0 : index
    %3 = vector.load %arg3[%c0_3, %c0_4] : memref<1x8xf32, #tpu.memory_space<vmem>>, vector<1x8xf32>
    %4 = vector.broadcast %3 : vector<1x8xf32> to vector<512x8xf32>
    %5 = arith.addf %2, %4 : vector<512x8xf32>
    %cst_5 = arith.constant 0.000000e+00 : f32
    %6 = vector.broadcast %cst_5 : f32 to vector<512x8xf32>
    %7 = arith.maximumf %5, %6 : vector<512x8xf32>
    %c0_6 = arith.constant 0 : index
    %c0_7 = arith.constant 0 : index
    %8 = vector.load %arg4[%c0_6, %c0_7] : memref<512x8xf32, #tpu.memory_space<vmem>>, vector<512x8xf32>
    tpu.vector_store %arg4[%c0_6, %c0_7], %7 {strides = array<i32>} : memref<512x8xf32, #tpu.memory_space<vmem>>, vector<512x8xf32>,
    return
  }
  func.func @transform_0(%arg0: i32) -> (i32, i32) {
    %c0_i32 = arith.constant 0 : i32
    %c0_i32_0 = arith.constant 0 : i32
    %c0_i32_1 = arith.constant 0 : i32
    return %c0_i32, %c0_i32_0 : i32, i32
  }
  func.func @transform_1(%arg0: i32) -> (i32, i32) {
    %c0_i32 = arith.constant 0 : i32
    %c0_i32_0 = arith.constant 0 : i32
    %c0_i32_1 = arith.constant 0 : i32
    return %c0_i32, %c0_i32_0 : i32, i32
  }
  func.func @transform_2(%arg0: i32) -> (i32, i32) {
    %c0_i32 = arith.constant 0 : i32
    %c0_i32_0 = arith.constant 0 : i32
    %c0_i32_1 = arith.constant 0 : i32
    return %c0_i32, %c0_i32_0 : i32, i32
  }
  func.func @transform_3(%arg0: i32) -> (i32, i32) {
    %c0_i32 = arith.constant 0 : i32
    %c0_i32_0 = arith.constant 0 : i32
    %c0_i32_1 = arith.constant 0 : i32
    return %c0_i32, %c0_i32_0 : i32, i32
  }
}

module attributes {stable_mosaic.version = 11 : i64} {
  func.func @_a2s_fused_kernel(%arg0: i32, %arg1: memref<2x2048xf32, #tpu.memory_space<vmem>>, %arg2: memref<2048x128xbf16, #tpu.memory_space<vmem>>, %arg3: memref<1x128xf32, #tpu.memory_space<vmem>>, %arg4: memref<128x10xf32, #tpu.memory_space<vmem>>, %arg5: memref<1x10xf32, #tpu.memory_space<vmem>>, %arg6: memref<2x10xf32, #tpu.memory_space<vmem>>, %arg7: memref<8x2048xbf16, #tpu.memory_space<vmem>>, %arg8: memref<8x128xf32, #tpu.memory_space<vmem>>) attributes {dimension_semantics = [#tpu.dimension_semantics<arbitrary>], iteration_bounds = array<i64: 1>, scalar_prefetch = 0 : i64, scratch_operands = 2 : i64, tpu.core_type = #tpu.core_type<tc>, window_params = [{pipeline_mode = #tpu.pipeline_mode<synchronous>, transform_indices = @transform_0, window_bounds = array<i64: 2, 2048>}, {pipeline_mode = #tpu.pipeline_mode<synchronous>, transform_indices = @transform_1, window_bounds = array<i64: 2048, 128>}, {pipeline_mode = #tpu.pipeline_mode<synchronous>, transform_indices = @transform_2, window_bounds = array<i64: 1, 128>}, {pipeline_mode = #tpu.pipeline_mode<synchronous>, transform_indices = @transform_3, window_bounds = array<i64: 128, 10>}, {pipeline_mode = #tpu.pipeline_mode<synchronous>, transform_indices = @transform_4, window_bounds = array<i64: 1, 10>}, {pipeline_mode = #tpu.pipeline_mode<synchronous>, transform_indices = @transform_5, window_bounds = array<i64: 2, 10>}]} {
    %c0 = arith.constant 0 : index
    %c0_0 = arith.constant 0 : index
    %0 = vector.load %arg1[%c0, %c0_0] : memref<2x2048xf32, #tpu.memory_space<vmem>>, vector<2x2048xf32>
    %cst = arith.constant 0.000000e+00 : f32
    %cst_1 = arith.constant 1.000000e+00 : f32
    %1 = vector.broadcast %cst : f32 to vector<2x2048xf32>
    %2 = arith.maximumf %1, %0 : vector<2x2048xf32>
    %3 = vector.broadcast %cst_1 : f32 to vector<2x2048xf32>
    %4 = arith.minimumf %3, %2 : vector<2x2048xf32>
    %cst_2 = arith.constant 1.250000e-01 : f32
    %5 = vector.broadcast %cst_2 : f32 to vector<2x2048xf32>
    %6 = arith.cmpf oge, %4, %5 : vector<2x2048xf32>
    %7 = arith.extui %6 : vector<2x2048xi1> to vector<2x2048xi32>
    %8 = arith.sitofp %7 : vector<2x2048xi32> to vector<2x2048xf32>
    %9 = arith.truncf %8 : vector<2x2048xf32> to vector<2x2048xbf16>
    %c0_3 = arith.constant 0 : index
    %c0_4 = arith.constant 0 : index
    %10 = vector.load %arg7[%c0_3, %c0_4] : memref<8x2048xbf16, #tpu.memory_space<vmem>>, vector<2x2048xbf16>
    tpu.vector_store %arg7[%c0_3, %c0_4], %9 {strides = array<i32>} : memref<8x2048xbf16, #tpu.memory_space<vmem>>, vector<2x2048xbf16>,
    %cst_5 = arith.constant 3.750000e-01 : f32
    %11 = vector.broadcast %cst_5 : f32 to vector<2x2048xf32>
    %12 = arith.cmpf oge, %4, %11 : vector<2x2048xf32>
    %13 = arith.extui %12 : vector<2x2048xi1> to vector<2x2048xi32>
    %14 = arith.sitofp %13 : vector<2x2048xi32> to vector<2x2048xf32>
    %15 = arith.truncf %14 : vector<2x2048xf32> to vector<2x2048xbf16>
    %c2 = arith.constant 2 : index
    %c0_6 = arith.constant 0 : index
    %16 = vector.load %arg7[%c2, %c0_6] : memref<8x2048xbf16, #tpu.memory_space<vmem>>, vector<2x2048xbf16>
    tpu.vector_store %arg7[%c2, %c0_6], %15 {strides = array<i32>} : memref<8x2048xbf16, #tpu.memory_space<vmem>>, vector<2x2048xbf16>,
    %cst_7 = arith.constant 6.250000e-01 : f32
    %17 = vector.broadcast %cst_7 : f32 to vector<2x2048xf32>
    %18 = arith.cmpf oge, %4, %17 : vector<2x2048xf32>
    %19 = arith.extui %18 : vector<2x2048xi1> to vector<2x2048xi32>
    %20 = arith.sitofp %19 : vector<2x2048xi32> to vector<2x2048xf32>
    %21 = arith.truncf %20 : vector<2x2048xf32> to vector<2x2048xbf16>
    %c4 = arith.constant 4 : index
    %c0_8 = arith.constant 0 : index
    %22 = vector.load %arg7[%c4, %c0_8] : memref<8x2048xbf16, #tpu.memory_space<vmem>>, vector<2x2048xbf16>
    tpu.vector_store %arg7[%c4, %c0_8], %21 {strides = array<i32>} : memref<8x2048xbf16, #tpu.memory_space<vmem>>, vector<2x2048xbf16>,
    %cst_9 = arith.constant 8.750000e-01 : f32
    %23 = vector.broadcast %cst_9 : f32 to vector<2x2048xf32>
    %24 = arith.cmpf oge, %4, %23 : vector<2x2048xf32>
    %25 = arith.extui %24 : vector<2x2048xi1> to vector<2x2048xi32>
    %26 = arith.sitofp %25 : vector<2x2048xi32> to vector<2x2048xf32>
    %27 = arith.truncf %26 : vector<2x2048xf32> to vector<2x2048xbf16>
    %c6 = arith.constant 6 : index
    %c0_10 = arith.constant 0 : index
    %28 = vector.load %arg7[%c6, %c0_10] : memref<8x2048xbf16, #tpu.memory_space<vmem>>, vector<2x2048xbf16>
    tpu.vector_store %arg7[%c6, %c0_10], %27 {strides = array<i32>} : memref<8x2048xbf16, #tpu.memory_space<vmem>>, vector<2x2048xbf16>,
    %c0_11 = arith.constant 0 : index
    %c0_12 = arith.constant 0 : index
    %29 = vector.load %arg7[%c0_11, %c0_12] : memref<8x2048xbf16, #tpu.memory_space<vmem>>, vector<8x2048xbf16>
    %c0_13 = arith.constant 0 : index
    %c0_14 = arith.constant 0 : index
    %30 = vector.load %arg2[%c0_13, %c0_14] : memref<2048x128xbf16, #tpu.memory_space<vmem>>, vector<2048x128xbf16>
    %cst_15 = arith.constant dense<0.000000e+00> : vector<8x128xf32>
    %31 = tpu.matmul %29, %30, %cst_15 {dimension_numbers = #tpu.dot_dimension_numbers<[1], [0], [0], [1], [0, 0, 1, 1], [], []>} : vector<8x2048xbf16>, vector<2048x128xbf16>, vector<8x128xf32> -> vector<8x128xf32>
    %c0_16 = arith.constant 0 : index
    %c0_17 = arith.constant 0 : index
    %32 = vector.load %arg3[%c0_16, %c0_17] : memref<1x128xf32, #tpu.memory_space<vmem>>, vector<1x128xf32>
    %33 = vector.broadcast %32 : vector<1x128xf32> to vector<8x128xf32>
    %34 = arith.addf %31, %33 : vector<8x128xf32>
    %c0_18 = arith.constant 0 : index
    %c0_19 = arith.constant 0 : index
    %35 = vector.load %arg8[%c0_18, %c0_19] : memref<8x128xf32, #tpu.memory_space<vmem>>, vector<8x128xf32>
    tpu.vector_store %arg8[%c0_18, %c0_19], %34 {strides = array<i32>} : memref<8x128xf32, #tpu.memory_space<vmem>>, vector<8x128xf32>,
    %cst_20 = arith.constant 0.000000e+00 : f32
    %36 = vector.broadcast %cst_20 : f32 to vector<2x128xf32>
    %cst_21 = arith.constant 0.000000e+00 : f32
    %37 = vector.broadcast %cst_21 : f32 to vector<2x128xf32>
    %c0_22 = arith.constant 0 : index
    %c0_23 = arith.constant 0 : index
    %38 = vector.load %arg8[%c0_22, %c0_23] : memref<8x128xf32, #tpu.memory_space<vmem>>, vector<2x128xf32>
    %cst_24 = arith.constant 5.000000e-01 : f32
    %39 = vector.broadcast %cst_24 : f32 to vector<2x128xf32>
    %40 = arith.mulf %36, %39 : vector<2x128xf32>
    %41 = arith.addf %40, %38 : vector<2x128xf32>
    %cst_25 = arith.constant 1.000000e+00 : f32
    %42 = vector.broadcast %cst_25 : f32 to vector<2x128xf32>
    %43 = arith.cmpf oge, %41, %42 : vector<2x128xf32>
    %44 = arith.extui %43 : vector<2x128xi1> to vector<2x128xi32>
    %45 = arith.sitofp %44 : vector<2x128xi32> to vector<2x128xf32>
    %cst_26 = arith.constant 1.000000e+00 : f32
    %46 = vector.broadcast %cst_26 : f32 to vector<2x128xf32>
    %47 = arith.mulf %45, %46 : vector<2x128xf32>
    %48 = arith.subf %41, %47 : vector<2x128xf32>
    %49 = arith.addf %37, %45 : vector<2x128xf32>
    %c2_27 = arith.constant 2 : index
    %c0_28 = arith.constant 0 : index
    %50 = vector.load %arg8[%c2_27, %c0_28] : memref<8x128xf32, #tpu.memory_space<vmem>>, vector<2x128xf32>
    %cst_29 = arith.constant 5.000000e-01 : f32
    %51 = vector.broadcast %cst_29 : f32 to vector<2x128xf32>
    %52 = arith.mulf %48, %51 : vector<2x128xf32>
    %53 = arith.addf %52, %50 : vector<2x128xf32>
    %cst_30 = arith.constant 1.000000e+00 : f32
    %54 = vector.broadcast %cst_30 : f32 to vector<2x128xf32>
    %55 = arith.cmpf oge, %53, %54 : vector<2x128xf32>
    %56 = arith.extui %55 : vector<2x128xi1> to vector<2x128xi32>
    %57 = arith.sitofp %56 : vector<2x128xi32> to vector<2x128xf32>
    %cst_31 = arith.constant 1.000000e+00 : f32
    %58 = vector.broadcast %cst_31 : f32 to vector<2x128xf32>
    %59 = arith.mulf %57, %58 : vector<2x128xf32>
    %60 = arith.subf %53, %59 : vector<2x128xf32>
    %61 = arith.addf %49, %57 : vector<2x128xf32>
    %c4_32 = arith.constant 4 : index
    %c0_33 = arith.constant 0 : index
    %62 = vector.load %arg8[%c4_32, %c0_33] : memref<8x128xf32, #tpu.memory_space<vmem>>, vector<2x128xf32>
    %cst_34 = arith.constant 5.000000e-01 : f32
    %63 = vector.broadcast %cst_34 : f32 to vector<2x128xf32>
    %64 = arith.mulf %60, %63 : vector<2x128xf32>
    %65 = arith.addf %64, %62 : vector<2x128xf32>
    %cst_35 = arith.constant 1.000000e+00 : f32
    %66 = vector.broadcast %cst_35 : f32 to vector<2x128xf32>
    %67 = arith.cmpf oge, %65, %66 : vector<2x128xf32>
    %68 = arith.extui %67 : vector<2x128xi1> to vector<2x128xi32>
    %69 = arith.sitofp %68 : vector<2x128xi32> to vector<2x128xf32>
    %cst_36 = arith.constant 1.000000e+00 : f32
    %70 = vector.broadcast %cst_36 : f32 to vector<2x128xf32>
    %71 = arith.mulf %69, %70 : vector<2x128xf32>
    %72 = arith.subf %65, %71 : vector<2x128xf32>
    %73 = arith.addf %61, %69 : vector<2x128xf32>
    %c6_37 = arith.constant 6 : index
    %c0_38 = arith.constant 0 : index
    %74 = vector.load %arg8[%c6_37, %c0_38] : memref<8x128xf32, #tpu.memory_space<vmem>>, vector<2x128xf32>
    %cst_39 = arith.constant 5.000000e-01 : f32
    %75 = vector.broadcast %cst_39 : f32 to vector<2x128xf32>
    %76 = arith.mulf %72, %75 : vector<2x128xf32>
    %77 = arith.addf %76, %74 : vector<2x128xf32>
    %cst_40 = arith.constant 1.000000e+00 : f32
    %78 = vector.broadcast %cst_40 : f32 to vector<2x128xf32>
    %79 = arith.cmpf oge, %77, %78 : vector<2x128xf32>
    %80 = arith.extui %79 : vector<2x128xi1> to vector<2x128xi32>
    %81 = arith.sitofp %80 : vector<2x128xi32> to vector<2x128xf32>
    %82 = arith.addf %73, %81 : vector<2x128xf32>
    %cst_41 = arith.constant 2.500000e-01 : f32
    %83 = vector.broadcast %cst_41 : f32 to vector<2x128xf32>
    %84 = arith.mulf %82, %83 : vector<2x128xf32>
    %c0_42 = arith.constant 0 : index
    %c0_43 = arith.constant 0 : index
    %85 = vector.load %arg4[%c0_42, %c0_43] : memref<128x10xf32, #tpu.memory_space<vmem>>, vector<128x10xf32>
    %cst_44 = arith.constant dense<0.000000e+00> : vector<2x10xf32>
    %86 = tpu.matmul %84, %85, %cst_44 {dimension_numbers = #tpu.dot_dimension_numbers<[1], [0], [0], [1], [0, 0, 1, 1], [], []>} : vector<2x128xf32>, vector<128x10xf32>, vector<2x10xf32> -> vector<2x10xf32>
    %c0_45 = arith.constant 0 : index
    %c0_46 = arith.constant 0 : index
    %87 = vector.load %arg5[%c0_45, %c0_46] : memref<1x10xf32, #tpu.memory_space<vmem>>, vector<1x10xf32>
    %88 = vector.broadcast %87 : vector<1x10xf32> to vector<2x10xf32>
    %89 = arith.addf %86, %88 : vector<2x10xf32>
    %c0_47 = arith.constant 0 : index
    %c0_48 = arith.constant 0 : index
    %90 = vector.load %arg6[%c0_47, %c0_48] : memref<2x10xf32, #tpu.memory_space<vmem>>, vector<2x10xf32>
    tpu.vector_store %arg6[%c0_47, %c0_48], %89 {strides = array<i32>} : memref<2x10xf32, #tpu.memory_space<vmem>>, vector<2x10xf32>,
    return
  }
  func.func @transform_0(%arg0: i32) -> (i32, i32) {
    %c0_i32 = arith.constant 0 : i32
    %c0_i32_0 = arith.constant 0 : i32
    %c0_i32_1 = arith.constant 0 : i32
    return %c0_i32, %c0_i32_0 : i32, i32
  }
  func.func @transform_1(%arg0: i32) -> (i32, i32) {
    %c0_i32 = arith.constant 0 : i32
    %c0_i32_0 = arith.constant 0 : i32
    %c0_i32_1 = arith.constant 0 : i32
    return %c0_i32, %c0_i32_0 : i32, i32
  }
  func.func @transform_2(%arg0: i32) -> (i32, i32) {
    %c0_i32 = arith.constant 0 : i32
    %c0_i32_0 = arith.constant 0 : i32
    %c0_i32_1 = arith.constant 0 : i32
    return %c0_i32, %c0_i32_0 : i32, i32
  }
  func.func @transform_3(%arg0: i32) -> (i32, i32) {
    %c0_i32 = arith.constant 0 : i32
    %c0_i32_0 = arith.constant 0 : i32
    %c0_i32_1 = arith.constant 0 : i32
    return %c0_i32, %c0_i32_0 : i32, i32
  }
  func.func @transform_4(%arg0: i32) -> (i32, i32) {
    %c0_i32 = arith.constant 0 : i32
    %c0_i32_0 = arith.constant 0 : i32
    %c0_i32_1 = arith.constant 0 : i32
    return %c0_i32, %c0_i32_0 : i32, i32
  }
  func.func @transform_5(%arg0: i32) -> (i32, i32) {
    %c0_i32 = arith.constant 0 : i32
    %c0_i32_0 = arith.constant 0 : i32
    %c0_i32_1 = arith.constant 0 : i32
    return %c0_i32, %c0_i32_0 : i32, i32
  }
}

</mosaic_0001>

<llo_original>
// kernel: a2s_forward.2
$region0: #{a2s_forward.2}
  #allocation0 [shape = 'u32[]', space=smem, size = 0x4, offset = 0x4, fixed_abs, tag = 'smem constant byte address 0x4 - core index']
  #allocation1 [shape = 'u32[144,128]{1,0:T(1,128)}', space=vmem, size = 0x12000, scoped, tag = 'internal scratch']
  %s0 = inlined_call_operand.vmem [shape: f32[512,128], index: 0, kind: input, shape index: {}]
  %s1 = inlined_call_operand.vmem [shape: f32[128,8], index: 1, kind: input, shape index: {}]
  %s2 = inlined_call_operand.vmem [shape: f32[1,8], index: 2, kind: input, shape index: {}]
  %s3 = inlined_call_operand.vmem [shape: f32[512,8], index: 3, kind: output, shape index: {}]
  %s4 = sld [smem:[#allocation0]]
  $region22: #{a2s_forward.2} parent=0
    _
  %s6 = ssub.s32 1, %s4
  %s7 = scalar_select 0, %s6, %s4
  // Predicated region
  $region2: #{a2s_forward.2} parent=0 // pred_check
    _
  $region3: #{a2s_forward.2} parent=0 // pred_check_branch
    %9 = sbr.rel (0) target = $region5
  $region4: #{a2s_forward.2} parent=0 // pred_region
    _
  $region5: #{a2s_forward.2} parent=0 // pred_fallthru
    _
  // Predicated region
  $region6: #{a2s_forward.2} parent=0 // pred_check
    _
  $region7: #{a2s_forward.2} parent=0 // pred_check_branch
    %11 = sbr.rel (0) target = $region9
  $region8: #{a2s_forward.2} parent=0 // pred_region
    _
  $region9: #{a2s_forward.2} parent=0 // pred_fallthru
    _
  // Predicated region
  $region10: #{a2s_forward.2} parent=0 // pred_check
    _
  $region11: #{a2s_forward.2} parent=0 // pred_check_branch
    %13 = sbr.rel (0) target = $region13
  $region12: #{a2s_forward.2} parent=0 // pred_region
    _
  $region13: #{a2s_forward.2} parent=0 // pred_fallthru
    _
  %v14 = vld [vmem:[%s0] sm:$0xff]
  %v15 = vld [vmem:[%s0 + $0x8] sm:$0xff]
  %v16 = vld [vmem:[%s0 + $0x10] sm:$0xff]
  %v17 = vld [vmem:[%s0 + $0x18] sm:$0xff]
  %v18 = vld [vmem:[%s0 + $0x20] sm:$0xff]
  %v19 = vld [vmem:[%s0 + $0x28] sm:$0xff]
  %v20 = vld [vmem:[%s0 + $0x30] sm:$0xff]
  %v21 = vld [vmem:[%s0 + $0x38] sm:$0xff]
  %v22 = vld [vmem:[%s0 + $0x40] sm:$0xff]
  %v23 = vld [vmem:[%s0 + $0x48] sm:$0xff]
  %v24 = vld [vmem:[%s0 + $0x50] sm:$0xff]
  %v25 = vld [vmem:[%s0 + $0x58] sm:$0xff]
  %v26 = vld [vmem:[%s0 + $0x60] sm:$0xff]
  %v27 = vld [vmem:[%s0 + $0x68] sm:$0xff]
  %v28 = vld [vmem:[%s0 + $0x70] sm:$0xff]
  %v29 = vld [vmem:[%s0 + $0x78] sm:$0xff]
  %v30 = vld [vmem:[%s0 + $0x80] sm:$0xff]
  %v31 = vld [vmem:[%s0 + $0x88] sm:$0xff]
  %v32 = vld [vmem:[%s0 + $0x90] sm:$0xff]
  %v33 = vld [vmem:[%s0 + $0x98] sm:$0xff]
  %v34 = vld [vmem:[%s0 + $0xa0] sm:$0xff]
  %v35 = vld [vmem:[%s0 + $0xa8] sm:$0xff]
  %v36 = vld [vmem:[%s0 + $0xb0] sm:$0xff]
  %v37 = vld [vmem:[%s0 + $0xb8] sm:$0xff]
  %v38 = vld [vmem:[%s0 + $0xc0] sm:$0xff]
  %v39 = vld [vmem:[%s0 + $0xc8] sm:$0xff]
  %v40 = vld [vmem:[%s0 + $0xd0] sm:$0xff]
  %v41 = vld [vmem:[%s0 + $0xd8] sm:$0xff]
  %v42 = vld [vmem:[%s0 + $0xe0] sm:$0xff]
  %v43 = vld [vmem:[%s0 + $0xe8] sm:$0xff]
  %v44 = vld [vmem:[%s0 + $0xf0] sm:$0xff]
  %v45 = vld [vmem:[%s0 + $0xf8] sm:$0xff]
  %v46 = vld [vmem:[%s0 + $0x100] sm:$0xff]
  %v47 = vld [vmem:[%s0 + $0x108] sm:$0xff]
  %v48 = vld [vmem:[%s0 + $0x110] sm:$0xff]
  %v49 = vld [vmem:[%s0 + $0x118] sm:$0xff]
  %v50 = vld [vmem:[%s0 + $0x120] sm:$0xff]
  %v51 = vld [vmem:[%s0 + $0x128] sm:$0xff]
  %v52 = vld [vmem:[%s0 + $0x130] sm:$0xff]
  %v53 = vld [vmem:[%s0 + $0x138] sm:$0xff]
  %v54 = vld [vmem:[%s0 + $0x140] sm:$0xff]
  %v55 = vld [vmem:[%s0 + $0x148] sm:$0xff]
  %v56 = vld [vmem:[%s0 + $0x150] sm:$0xff]
  %v57 = vld [vmem:[%s0 + $0x158] sm:$0xff]
  %v58 = vld [vmem:[%s0 + $0x160] sm:$0xff]
  %v59 = vld [vmem:[%s0 + $0x168] sm:$0xff]
  %v60 = vld [vmem:[%s0 + $0x170] sm:$0xff]
  %v61 = vld [vmem:[%s0 + $0x178] sm:$0xff]
  %v62 = vld [vmem:[%s0 + $0x180] sm:$0xff]
  %v63 = vld [vmem:[%s0 + $0x188] sm:$0xff]
  %v64 = vld [vmem:[%s0 + $0x190] sm:$0xff]
  %v65 = vld [vmem:[%s0 + $0x198] sm:$0xff]
  %v66 = vld [vmem:[%s0 + $0x1a0] sm:$0xff]
  %v67 = vld [vmem:[%s0 + $0x1a8] sm:$0xff]
  %v68 = vld [vmem:[%s0 + $0x1b0] sm:$0xff]
  %v69 = vld [vmem:[%s0 + $0x1b8] sm:$0xff]
  %v70 = vld [vmem:[%s0 + $0x1c0] sm:$0xff]
  %v71 = vld [vmem:[%s0 + $0x1c8] sm:$0xff]
  %v72 = vld [vmem:[%s0 + $0x1d0] sm:$0xff]
  %v73 = vld [vmem:[%s0 + $0x1d8] sm:$0xff]
  %v74 = vld [vmem:[%s0 + $0x1e0] sm:$0xff]
  %v75 = vld [vmem:[%s0 + $0x1e8] sm:$0xff]
  %v76 = vld [vmem:[%s0 + $0x1f0] sm:$0xff]
  %v77 = vld [vmem:[%s0 + $0x1f8] sm:$0xff]
  %v78 = vld [vmem:[%s1] sm:$0xff]
  %v79 = vld [vmem:[%s1 + $0x8] sm:$0xff]
  %v80 = vld [vmem:[%s1 + $0x10] sm:$0xff]
  %v81 = vld [vmem:[%s1 + $0x18] sm:$0xff]
  %v82 = vld [vmem:[%s1 + $0x20] sm:$0xff]
  %v83 = vld [vmem:[%s1 + $0x28] sm:$0xff]
  %v84 = vld [vmem:[%s1 + $0x30] sm:$0xff]
  %v85 = vld [vmem:[%s1 + $0x38] sm:$0xff]
  %v86 = vld [vmem:[%s1 + $0x40] sm:$0xff]
  %v87 = vld [vmem:[%s1 + $0x48] sm:$0xff]
  %v88 = vld [vmem:[%s1 + $0x50] sm:$0xff]
  %v89 = vld [vmem:[%s1 + $0x58] sm:$0xff]
  %v90 = vld [vmem:[%s1 + $0x60] sm:$0xff]
  %v91 = vld [vmem:[%s1 + $0x68] sm:$0xff]
  %v92 = vld [vmem:[%s1 + $0x70] sm:$0xff]
  %v93 = vld [vmem:[%s1 + $0x78] sm:$0xff]
  %v94 = vld [vmem:[%s2] sm:$0x1]
  %v96 = vlaneseq
  %v97 = vshrl.u32 %v96, 7
  %v98 = vsub.s32 0, %v97
  %v99 = vrot.slane %v94, %v98
  %101 = vmatprep.subr.mxu0 0.0
  %102 = vmatpush1.msra.mxu0 %v78
  %103 = vmatprep.subr.mxu0 0.0
  %104 = vmatpush1.msra.mxu0 %v79
  %105 = vmatprep.subr.mxu0 0.0
  %106 = vmatpush1.msra.mxu0 %v80
  %107 = vmatprep.subr.mxu0 0.0
  %108 = vmatpush1.msra.mxu0 %v81
  %109 = vmatprep.subr.mxu0 0.0
  %110 = vmatpush1.msra.mxu0 %v82
  %111 = vmatprep.subr.mxu0 0.0
  %112 = vmatpush1.msra.mxu0 %v83
  %113 = vmatprep.subr.mxu0 0.0
  %114 = vmatpush1.msra.mxu0 %v84
  %115 = vmatprep.subr.mxu0 0.0
  %116 = vmatpush1.msra.mxu0 %v85
  %117 = vmatprep.subr.mxu0 0.0
  %118 = vmatpush1.msra.mxu0 %v86
  %119 = vmatprep.subr.mxu0 0.0
  %120 = vmatpush1.msra.mxu0 %v87
  %121 = vmatprep.subr.mxu0 0.0
  %122 = vmatpush1.msra.mxu0 %v88
  %123 = vmatprep.subr.mxu0 0.0
  %124 = vmatpush1.msra.mxu0 %v89
  %125 = vmatprep.subr.mxu0 0.0
  %126 = vmatpush1.msra.mxu0 %v90
  %127 = vmatprep.subr.mxu0 0.0
  %128 = vmatpush1.msra.mxu0 %v91
  %129 = vmatprep.subr.mxu0 0.0
  %130 = vmatpush1.msra.mxu0 %v92
  %131 = vmatprep.subr.mxu0 0.0
  %132 = vmatpush1.msra.mxu0 %v93
  %133 = vmatprep.subr.mxu0 0.0
  %134 = vmatpush1.msra.mxu0 0.0
  %135 = vmatprep.subr.mxu0 0.0
  %136 = vmatpush1.msra.mxu0 0.0
  %137 = vmatprep.subr.mxu0 0.0
  %138 = vmatpush1.msra.mxu0 0.0
  %139 = vmatprep.subr.mxu0 0.0
  %140 = vmatpush1.msra.mxu0 0.0
  %141 = vmatprep.subr.mxu0 0.0
  %142 = vmatpush1.msra.mxu0 0.0
  %143 = vmatprep.subr.mxu0 0.0
  %144 = vmatpush1.msra.mxu0 0.0
  %145 = vmatprep.subr.mxu0 0.0
  %146 = vmatpush1.msra.mxu0 0.0
  %147 = vmatprep.subr.mxu0 0.0
  %148 = vmatpush1.msra.mxu0 0.0
  %149 = vmatprep.subr.mxu0 0.0
  %150 = vmatpush1.msra.mxu0 0.0
  %151 = vmatprep.subr.mxu0 0.0
  %152 = vmatpush1.msra.mxu0 0.0
  %153 = vmatprep.subr.mxu0 0.0
  %154 = vmatpush1.msra.mxu0 0.0
  %155 = vmatprep.subr.mxu0 0.0
  %156 = vmatpush1.msra.mxu0 0.0
  %157 = vmatprep.subr.mxu0 0.0
  %158 = vmatpush1.msra.mxu0 0.0
  %159 = vmatprep.subr.mxu0 0.0
  %160 = vmatpush1.msra.mxu0 0.0
  %161 = vmatprep.subr.mxu0 0.0
  %162 = vmatpush1.msra.mxu0 0.0
  %163 = vmatprep.subr.mxu0 0.0
  %164 = vmatpush1.msra.mxu0 0.0
  %165 = vmatprep.mubr.f32.mxu0 0.0
  %166 = vmatmul.mubr.f32.gmra.mrb[0].mxu0 %v14
  %v167 = vpop.f32.mrb[0].mxu0
  %v168 = vadd.f32 %v99, %v167
  %v169 = vpop.f32.mrb[0].mxu0
  %170 = vmatprep.mubr.f32.mxu0 0.0
  %171 = vmatmul.mubr.f32.gmra.mrb[0].mxu0 %v15
  %v172 = vpop.f32.mrb[0].mxu0
  %v173 = vadd.f32 %v99, %v172
  %v174 = vpop.f32.mrb[0].mxu0
  %175 = vmatprep.mubr.f32.mxu0 0.0
  %176 = vmatmul.mubr.f32.gmra.mrb[0].mxu0 %v16
  %v177 = vpop.f32.mrb[0].mxu0
  %v178 = vadd.f32 %v99, %v177
  %v179 = vpop.f32.mrb[0].mxu0
  %180 = vmatprep.mubr.f32.mxu0 0.0
  %181 = vmatmul.mubr.f32.gmra.mrb[0].mxu0 %v17
  %v182 = vpop.f32.mrb[0].mxu0
  %v183 = vadd.f32 %v99, %v182
  %v184 = vpop.f32.mrb[0].mxu0
  %185 = vmatprep.mubr.f32.mxu0 0.0
  %186 = vmatmul.mubr.f32.gmra.mrb[0].mxu0 %v18
  %v187 = vpop.f32.mrb[0].mxu0
  %v188 = vadd.f32 %v99, %v187
  %v189 = vpop.f32.mrb[0].mxu0
  %190 = vmatprep.mubr.f32.mxu0 0.0
  %191 = vmatmul.mubr.f32.gmra.mrb[0].mxu0 %v19
  %v192 = vpop.f32.mrb[0].mxu0
  %v193 = vadd.f32 %v99, %v192
  %v194 = vpop.f32.mrb[0].mxu0
  %195 = vmatprep.mubr.f32.mxu0 0.0
  %196 = vmatmul.mubr.f32.gmra.mrb[0].mxu0 %v20
  %v197 = vpop.f32.mrb[0].mxu0
  %v198 = vadd.f32 %v99, %v197
  %v199 = vpop.f32.mrb[0].mxu0
  %200 = vmatprep.mubr.f32.mxu0 0.0
  %201 = vmatmul.mubr.f32.gmra.mrb[0].mxu0 %v21
  %v202 = vpop.f32.mrb[0].mxu0
  %v203 = vadd.f32 %v99, %v202
  %v204 = vpop.f32.mrb[0].mxu0
  %205 = vmatprep.mubr.f32.mxu0 0.0
  %206 = vmatmul.mubr.f32.gmra.mrb[0].mxu0 %v22
  %v207 = vpop.f32.mrb[0].mxu0
  %v208 = vadd.f32 %v99, %v207
  %v209 = vpop.f32.mrb[0].mxu0
  %210 = vmatprep.mubr.f32.mxu0 0.0
  %211 = vmatmul.mubr.f32.gmra.mrb[0].mxu0 %v23
  %v212 = vpop.f32.mrb[0].mxu0
  %v213 = vadd.f32 %v99, %v212
  %v214 = vpop.f32.mrb[0].mxu0
  %215 = vmatprep.mubr.f32.mxu0 0.0
  %216 = vmatmul.mubr.f32.gmra.mrb[0].mxu0 %v24
  %v217 = vpop.f32.mrb[0].mxu0
  %v218 = vadd.f32 %v99, %v217
  %v219 = vpop.f32.mrb[0].mxu0
  %220 = vmatprep.mubr.f32.mxu0 0.0
  %221 = vmatmul.mubr.f32.gmra.mrb[0].mxu0 %v25
  %v222 = vpop.f32.mrb[0].mxu0
  %v223 = vadd.f32 %v99, %v222
  %v224 = vpop.f32.mrb[0].mxu0
  %225 = vmatprep.mubr.f32.mxu0 0.0
  %226 = vmatmul.mubr.f32.gmra.mrb[0].mxu0 %v26
  %v227 = vpop.f32.mrb[0].mxu0
  %v228 = vadd.f32 %v99, %v227
  %v229 = vpop.f32.mrb[0].mxu0
  %230 = vmatprep.mubr.f32.mxu0 0.0
  %231 = vmatmul.mubr.f32.gmra.mrb[0].mxu0 %v27
  %v232 = vpop.f32.mrb[0].mxu0
  %v233 = vadd.f32 %v99, %v232
  %v234 = vpop.f32.mrb[0].mxu0
  %235 = vmatprep.mubr.f32.mxu0 0.0
  %236 = vmatmul.mubr.f32.gmra.mrb[0].mxu0 %v28
  %v237 = vpop.f32.mrb[0].mxu0
  %v238 = vadd.f32 %v99, %v237
  %v239 = vpop.f32.mrb[0].mxu0
  %240 = vmatprep.mubr.f32.mxu0 0.0
  %241 = vmatmul.mubr.f32.gmra.mrb[0].mxu0 %v29
  %v242 = vpop.f32.mrb[0].mxu0
  %v243 = vadd.f32 %v99, %v242
  %v244 = vpop.f32.mrb[0].mxu0
  %245 = vmatprep.mubr.f32.mxu0 0.0
  %246 = vmatmul.mubr.f32.gmra.mrb[0].mxu0 %v30
  %v247 = vpop.f32.mrb[0].mxu0
  %v248 = vadd.f32 %v99, %v247
  %v249 = vpop.f32.mrb[0].mxu0
  %250 = vmatprep.mubr.f32.mxu0 0.0
  %251 = vmatmul.mubr.f32.gmra.mrb[0].mxu0 %v31
  %v252 = vpop.f32.mrb[0].mxu0
  %v253 = vadd.f32 %v99, %v252
  %v254 = vpop.f32.mrb[0].mxu0
  %255 = vmatprep.mubr.f32.mxu0 0.0
  %256 = vmatmul.mubr.f32.gmra.mrb[0].mxu0 %v32
  %v257 = vpop.f32.mrb[0].mxu0
  %v258 = vadd.f32 %v99, %v257
  %v259 = vpop.f32.mrb[0].mxu0
  %260 = vmatprep.mubr.f32.mxu0 0.0
  %261 = vmatmul.mubr.f32.gmra.mrb[0].mxu0 %v33
  %v262 = vpop.f32.mrb[0].mxu0
  %v263 = vadd.f32 %v99, %v262
  %v264 = vpop.f32.mrb[0].mxu0
  %265 = vmatprep.mubr.f32.mxu0 0.0
  %266 = vmatmul.mubr.f32.gmra.mrb[0].mxu0 %v34
  %v267 = vpop.f32.mrb[0].mxu0
  %v268 = vadd.f32 %v99, %v267
  %v269 = vpop.f32.mrb[0].mxu0
  %270 = vmatprep.mubr.f32.mxu0 0.0
  %271 = vmatmul.mubr.f32.gmra.mrb[0].mxu0 %v35
  %v272 = vpop.f32.mrb[0].mxu0
  %v273 = vadd.f32 %v99, %v272
  %v274 = vpop.f32.mrb[0].mxu0
  %275 = vmatprep.mubr.f32.mxu0 0.0
  %276 = vmatmul.mubr.f32.gmra.mrb[0].mxu0 %v36
  %v277 = vpop.f32.mrb[0].mxu0
  %v278 = vadd.f32 %v99, %v277
  %v279 = vpop.f32.mrb[0].mxu0
  %280 = vmatprep.mubr.f32.mxu0 0.0
  %281 = vmatmul.mubr.f32.gmra.mrb[0].mxu0 %v37
  %v282 = vpop.f32.mrb[0].mxu0
  %v283 = vadd.f32 %v99, %v282
  %v284 = vpop.f32.mrb[0].mxu0
  %285 = vmatprep.mubr.f32.mxu0 0.0
  %286 = vmatmul.mubr.f32.gmra.mrb[0].mxu0 %v38
  %v287 = vpop.f32.mrb[0].mxu0
  %v288 = vadd.f32 %v99, %v287
  %v289 = vpop.f32.mrb[0].mxu0
  %290 = vmatprep.mubr.f32.mxu0 0.0
  %291 = vmatmul.mubr.f32.gmra.mrb[0].mxu0 %v39
  %v292 = vpop.f32.mrb[0].mxu0
  %v293 = vadd.f32 %v99, %v292
  %v294 = vpop.f32.mrb[0].mxu0
  %295 = vmatprep.mubr.f32.mxu0 0.0
  %296 = vmatmul.mubr.f32.gmra.mrb[0].mxu0 %v40
  %v297 = vpop.f32.mrb[0].mxu0
  %v298 = vadd.f32 %v99, %v297
  %v299 = vpop.f32.mrb[0].mxu0
  %300 = vmatprep.mubr.f32.mxu0 0.0
  %301 = vmatmul.mubr.f32.gmra.mrb[0].mxu0 %v41
  %v302 = vpop.f32.mrb[0].mxu0
  %v303 = vadd.f32 %v99, %v302
  %v304 = vpop.f32.mrb[0].mxu0
  %305 = vmatprep.mubr.f32.mxu0 0.0
  %306 = vmatmul.mubr.f32.gmra.mrb[0].mxu0 %v42
  %v307 = vpop.f32.mrb[0].mxu0
  %v308 = vadd.f32 %v99, %v307
  %v309 = vpop.f32.mrb[0].mxu0
  %310 = vmatprep.mubr.f32.mxu0 0.0
  %311 = vmatmul.mubr.f32.gmra.mrb[0].mxu0 %v43
  %v312 = vpop.f32.mrb[0].mxu0
  %v313 = vadd.f32 %v99, %v312
  %v314 = vpop.f32.mrb[0].mxu0
  %315 = vmatprep.mubr.f32.mxu0 0.0
  %316 = vmatmul.mubr.f32.gmra.mrb[0].mxu0 %v44
  %v317 = vpop.f32.mrb[0].mxu0
  %v318 = vadd.f32 %v99, %v317
  %v319 = vpop.f32.mrb[0].mxu0
  %320 = vmatprep.mubr.f32.mxu0 0.0
  %321 = vmatmul.mubr.f32.gmra.mrb[0].mxu0 %v45
  %v322 = vpop.f32.mrb[0].mxu0
  %v323 = vadd.f32 %v99, %v322
  %v324 = vpop.f32.mrb[0].mxu0
  %325 = vmatprep.mubr.f32.mxu0 0.0
  %326 = vmatmul.mubr.f32.gmra.mrb[0].mxu0 %v46
  %v327 = vpop.f32.mrb[0].mxu0
  %v328 = vadd.f32 %v99, %v327
  %v329 = vpop.f32.mrb[0].mxu0
  %330 = vmatprep.mubr.f32.mxu0 0.0
  %331 = vmatmul.mubr.f32.gmra.mrb[0].mxu0 %v47
  %v332 = vpop.f32.mrb[0].mxu0
  %v333 = vadd.f32 %v99, %v332
  %v334 = vpop.f32.mrb[0].mxu0
  %335 = vmatprep.mubr.f32.mxu0 0.0
  %336 = vmatmul.mubr.f32.gmra.mrb[0].mxu0 %v48
  %v337 = vpop.f32.mrb[0].mxu0
  %v338 = vadd.f32 %v99, %v337
  %v339 = vpop.f32.mrb[0].mxu0
  %340 = vmatprep.mubr.f32.mxu0 0.0
  %341 = vmatmul.mubr.f32.gmra.mrb[0].mxu0 %v49
  %v342 = vpop.f32.mrb[0].mxu0
  %v343 = vadd.f32 %v99, %v342
  %v344 = vpop.f32.mrb[0].mxu0
  %345 = vmatprep.mubr.f32.mxu0 0.0
  %346 = vmatmul.mubr.f32.gmra.mrb[0].mxu0 %v50
  %v347 = vpop.f32.mrb[0].mxu0
  %v348 = vadd.f32 %v99, %v347
  %v349 = vpop.f32.mrb[0].mxu0
  %350 = vmatprep.mubr.f32.mxu0 0.0
  %351 = vmatmul.mubr.f32.gmra.mrb[0].mxu0 %v51
  %v352 = vpop.f32.mrb[0].mxu0
  %v353 = vadd.f32 %v99, %v352
  %v354 = vpop.f32.mrb[0].mxu0
  %355 = vmatprep.mubr.f32.mxu0 0.0
  %356 = vmatmul.mubr.f32.gmra.mrb[0].mxu0 %v52
  %v357 = vpop.f32.mrb[0].mxu0
  %v358 = vadd.f32 %v99, %v357
  %v359 = vpop.f32.mrb[0].mxu0
  %360 = vmatprep.mubr.f32.mxu0 0.0
  %361 = vmatmul.mubr.f32.gmra.mrb[0].mxu0 %v53
  %v362 = vpop.f32.mrb[0].mxu0
  %v363 = vadd.f32 %v99, %v362
  %v364 = vpop.f32.mrb[0].mxu0
  %365 = vmatprep.mubr.f32.mxu0 0.0
  %366 = vmatmul.mubr.f32.gmra.mrb[0].mxu0 %v54
  %v367 = vpop.f32.mrb[0].mxu0
  %v368 = vadd.f32 %v99, %v367
  %v369 = vpop.f32.mrb[0].mxu0
  %370 = vmatprep.mubr.f32.mxu0 0.0
  %371 = vmatmul.mubr.f32.gmra.mrb[0].mxu0 %v55
  %v372 = vpop.f32.mrb[0].mxu0
  %v373 = vadd.f32 %v99, %v372
  %v374 = vpop.f32.mrb[0].mxu0
  %375 = vmatprep.mubr.f32.mxu0 0.0
  %376 = vmatmul.mubr.f32.gmra.mrb[0].mxu0 %v56
  %v377 = vpop.f32.mrb[0].mxu0
  %v378 = vadd.f32 %v99, %v377
  %v379 = vpop.f32.mrb[0].mxu0
  %380 = vmatprep.mubr.f32.mxu0 0.0
  %381 = vmatmul.mubr.f32.gmra.mrb[0].mxu0 %v57
  %v382 = vpop.f32.mrb[0].mxu0
  %v383 = vadd.f32 %v99, %v382
  %v384 = vpop.f32.mrb[0].mxu0
  %385 = vmatprep.mubr.f32.mxu0 0.0
  %386 = vmatmul.mubr.f32.gmra.mrb[0].mxu0 %v58
  %v387 = vpop.f32.mrb[0].mxu0
  %v388 = vadd.f32 %v99, %v387
  %v389 = vpop.f32.mrb[0].mxu0
  %390 = vmatprep.mubr.f32.mxu0 0.0
  %391 = vmatmul.mubr.f32.gmra.mrb[0].mxu0 %v59
  %v392 = vpop.f32.mrb[0].mxu0
  %v393 = vadd.f32 %v99, %v392
  %v394 = vpop.f32.mrb[0].mxu0
  %395 = vmatprep.mubr.f32.mxu0 0.0
  %396 = vmatmul.mubr.f32.gmra.mrb[0].mxu0 %v60
  %v397 = vpop.f32.mrb[0].mxu0
  %v398 = vadd.f32 %v99, %v397
  %v399 = vpop.f32.mrb[0].mxu0
  %400 = vmatprep.mubr.f32.mxu0 0.0
  %401 = vmatmul.mubr.f32.gmra.mrb[0].mxu0 %v61
  %v402 = vpop.f32.mrb[0].mxu0
  %v403 = vadd.f32 %v99, %v402
  %v404 = vpop.f32.mrb[0].mxu0
  %405 = vmatprep.mubr.f32.mxu0 0.0
  %406 = vmatmul.mubr.f32.gmra.mrb[0].mxu0 %v62
  %v407 = vpop.f32.mrb[0].mxu0
  %v408 = vadd.f32 %v99, %v407
  %v409 = vpop.f32.mrb[0].mxu0
  %410 = vmatprep.mubr.f32.mxu0 0.0
  %411 = vmatmul.mubr.f32.gmra.mrb[0].mxu0 %v63
  %v412 = vpop.f32.mrb[0].mxu0
  %v413 = vadd.f32 %v99, %v412
  %v414 = vpop.f32.mrb[0].mxu0
  %415 = vmatprep.mubr.f32.mxu0 0.0
  %416 = vmatmul.mubr.f32.gmra.mrb[0].mxu0 %v64
  %v417 = vpop.f32.mrb[0].mxu0
  %v418 = vadd.f32 %v99, %v417
  %v419 = vpop.f32.mrb[0].mxu0
  %420 = vmatprep.mubr.f32.mxu0 0.0
  %421 = vmatmul.mubr.f32.gmra.mrb[0].mxu0 %v65
  %v422 = vpop.f32.mrb[0].mxu0
  %v423 = vadd.f32 %v99, %v422
  %v424 = vpop.f32.mrb[0].mxu0
  %425 = vmatprep.mubr.f32.mxu0 0.0
  %426 = vmatmul.mubr.f32.gmra.mrb[0].mxu0 %v66
  %v427 = vpop.f32.mrb[0].mxu0
  %v428 = vadd.f32 %v99, %v427
  %v429 = vpop.f32.mrb[0].mxu0
  %430 = vmatprep.mubr.f32.mxu0 0.0
  %431 = vmatmul.mubr.f32.gmra.mrb[0].mxu0 %v67
  %v432 = vpop.f32.mrb[0].mxu0
  %v433 = vadd.f32 %v99, %v432
  %v434 = vpop.f32.mrb[0].mxu0
  %435 = vmatprep.mubr.f32.mxu0 0.0
  %436 = vmatmul.mubr.f32.gmra.mrb[0].mxu0 %v68
  %v437 = vpop.f32.mrb[0].mxu0
  %v438 = vadd.f32 %v99, %v437
  %v439 = vpop.f32.mrb[0].mxu0
  %440 = vmatprep.mubr.f32.mxu0 0.0
  %441 = vmatmul.mubr.f32.gmra.mrb[0].mxu0 %v69
  %v442 = vpop.f32.mrb[0].mxu0
  %v443 = vadd.f32 %v99, %v442
  %v444 = vpop.f32.mrb[0].mxu0
  %445 = vmatprep.mubr.f32.mxu0 0.0
  %446 = vmatmul.mubr.f32.gmra.mrb[0].mxu0 %v70
  %v447 = vpop.f32.mrb[0].mxu0
  %v448 = vadd.f32 %v99, %v447
  %v449 = vpop.f32.mrb[0].mxu0
  %450 = vmatprep.mubr.f32.mxu0 0.0
  %451 = vmatmul.mubr.f32.gmra.mrb[0].mxu0 %v71
  %v452 = vpop.f32.mrb[0].mxu0
  %v453 = vadd.f32 %v99, %v452
  %v454 = vpop.f32.mrb[0].mxu0
  %455 = vmatprep.mubr.f32.mxu0 0.0
  %456 = vmatmul.mubr.f32.gmra.mrb[0].mxu0 %v72
  %v457 = vpop.f32.mrb[0].mxu0
  %v458 = vadd.f32 %v99, %v457
  %v459 = vpop.f32.mrb[0].mxu0
  %460 = vmatprep.mubr.f32.mxu0 0.0
  %461 = vmatmul.mubr.f32.gmra.mrb[0].mxu0 %v73
  %v462 = vpop.f32.mrb[0].mxu0
  %v463 = vadd.f32 %v99, %v462
  %v464 = vpop.f32.mrb[0].mxu0
  %465 = vmatprep.mubr.f32.mxu0 0.0
  %466 = vmatmul.mubr.f32.gmra.mrb[0].mxu0 %v74
  %v467 = vpop.f32.mrb[0].mxu0
  %v468 = vadd.f32 %v99, %v467
  %v469 = vpop.f32.mrb[0].mxu0
  %470 = vmatprep.mubr.f32.mxu0 0.0
  %471 = vmatmul.mubr.f32.gmra.mrb[0].mxu0 %v75
  %v472 = vpop.f32.mrb[0].mxu0
  %v473 = vadd.f32 %v99, %v472
  %v474 = vpop.f32.mrb[0].mxu0
  %475 = vmatprep.mubr.f32.mxu0 0.0
  %476 = vmatmul.mubr.f32.gmra.mrb[0].mxu0 %v76
  %v477 = vpop.f32.mrb[0].mxu0
  %v478 = vadd.f32 %v99, %v477
  %v479 = vpop.f32.mrb[0].mxu0
  %480 = vmatprep.mubr.f32.mxu0 0.0
  %481 = vmatmul.mubr.f32.gmra.mrb[0].mxu0 %v77
  %v482 = vpop.f32.mrb[0].mxu0
  %v483 = vadd.f32 %v99, %v482
  %v484 = vpop.f32.mrb[0].mxu0
  %485 = vdwg.mxu0
  %v486 = vmax.f32 %v168, 0.0
  %v487 = vmax.f32 %v173, 0.0
  %v488 = vmax.f32 %v178, 0.0
  %v489 = vmax.f32 %v183, 0.0
  %v490 = vmax.f32 %v188, 0.0
  %v491 = vmax.f32 %v193, 0.0
  %v492 = vmax.f32 %v198, 0.0
  %v493 = vmax.f32 %v203, 0.0
  %v494 = vmax.f32 %v208, 0.0
  %v495 = vmax.f32 %v213, 0.0
  %v496 = vmax.f32 %v218, 0.0
  %v497 = vmax.f32 %v223, 0.0
  %v498 = vmax.f32 %v228, 0.0
  %v499 = vmax.f32 %v233, 0.0
  %v500 = vmax.f32 %v238, 0.0
  %v501 = vmax.f32 %v243, 0.0
  %v502 = vmax.f32 %v248, 0.0
  %v503 = vmax.f32 %v253, 0.0
  %v504 = vmax.f32 %v258, 0.0
  %v505 = vmax.f32 %v263, 0.0
  %v506 = vmax.f32 %v268, 0.0
  %v507 = vmax.f32 %v273, 0.0
  %v508 = vmax.f32 %v278, 0.0
  %v509 = vmax.f32 %v283, 0.0
  %v510 = vmax.f32 %v288, 0.0
  %v511 = vmax.f32 %v293, 0.0
  %v512 = vmax.f32 %v298, 0.0
  %v513 = vmax.f32 %v303, 0.0
  %v514 = vmax.f32 %v308, 0.0
  %v515 = vmax.f32 %v313, 0.0
  %v516 = vmax.f32 %v318, 0.0
  %v517 = vmax.f32 %v323, 0.0
  %v518 = vmax.f32 %v328, 0.0
  %v519 = vmax.f32 %v333, 0.0
  %v520 = vmax.f32 %v338, 0.0
  %v521 = vmax.f32 %v343, 0.0
  %v522 = vmax.f32 %v348, 0.0
  %v523 = vmax.f32 %v353, 0.0
  %v524 = vmax.f32 %v358, 0.0
  %v525 = vmax.f32 %v363, 0.0
  %v526 = vmax.f32 %v368, 0.0
  %v527 = vmax.f32 %v373, 0.0
  %v528 = vmax.f32 %v378, 0.0
  %v529 = vmax.f32 %v383, 0.0
  %v530 = vmax.f32 %v388, 0.0
  %v531 = vmax.f32 %v393, 0.0
  %v532 = vmax.f32 %v398, 0.0
  %v533 = vmax.f32 %v403, 0.0
  %v534 = vmax.f32 %v408, 0.0
  %v535 = vmax.f32 %v413, 0.0
  %v536 = vmax.f32 %v418, 0.0
  %v537 = vmax.f32 %v423, 0.0
  %v538 = vmax.f32 %v428, 0.0
  %v539 = vmax.f32 %v433, 0.0
  %v540 = vmax.f32 %v438, 0.0
  %v541 = vmax.f32 %v443, 0.0
  %v542 = vmax.f32 %v448, 0.0
  %v543 = vmax.f32 %v453, 0.0
  %v544 = vmax.f32 %v458, 0.0
  %v545 = vmax.f32 %v463, 0.0
  %v546 = vmax.f32 %v468, 0.0
  %v547 = vmax.f32 %v473, 0.0
  %v548 = vmax.f32 %v478, 0.0
  %v549 = vmax.f32 %v483, 0.0
  %vm550 = vcmask 64512
  %551 = vst.msk [vmem:[%s3] sm:$0xff] %vm550, %v486
  %552 = vst.msk [vmem:[%s3 + $0x8] sm:$0xff] %vm550, %v487
  %553 = vst.msk [vmem:[%s3 + $0x10] sm:$0xff] %vm550, %v488
  %554 = vst.msk [vmem:[%s3 + $0x18] sm:$0xff] %vm550, %v489
  %555 = vst.msk [vmem:[%s3 + $0x20] sm:$0xff] %vm550, %v490
  %556 = vst.msk [vmem:[%s3 + $0x28] sm:$0xff] %vm550, %v491
  %557 = vst.msk [vmem:[%s3 + $0x30] sm:$0xff] %vm550, %v492
  %558 = vst.msk [vmem:[%s3 + $0x38] sm:$0xff] %vm550, %v493
  %559 = vst.msk [vmem:[%s3 + $0x40] sm:$0xff] %vm550, %v494
  %560 = vst.msk [vmem:[%s3 + $0x48] sm:$0xff] %vm550, %v495
  %561 = vst.msk [vmem:[%s3 + $0x50] sm:$0xff] %vm550, %v496
  %562 = vst.msk [vmem:[%s3 + $0x58] sm:$0xff] %vm550, %v497
  %563 = vst.msk [vmem:[%s3 + $0x60] sm:$0xff] %vm550, %v498
  %564 = vst.msk [vmem:[%s3 + $0x68] sm:$0xff] %vm550, %v499
  %565 = vst.msk [vmem:[%s3 + $0x70] sm:$0xff] %vm550, %v500
  %566 = vst.msk [vmem:[%s3 + $0x78] sm:$0xff] %vm550, %v501
  %567 = vst.msk [vmem:[%s3 + $0x80] sm:$0xff] %vm550, %v502
  %568 = vst.msk [vmem:[%s3 + $0x88] sm:$0xff] %vm550, %v503
  %569 = vst.msk [vmem:[%s3 + $0x90] sm:$0xff] %vm550, %v504
  %570 = vst.msk [vmem:[%s3 + $0x98] sm:$0xff] %vm550, %v505
  %571 = vst.msk [vmem:[%s3 + $0xa0] sm:$0xff] %vm550, %v506
  %572 = vst.msk [vmem:[%s3 + $0xa8] sm:$0xff] %vm550, %v507
  %573 = vst.msk [vmem:[%s3 + $0xb0] sm:$0xff] %vm550, %v508
  %574 = vst.msk [vmem:[%s3 + $0xb8] sm:$0xff] %vm550, %v509
  %575 = vst.msk [vmem:[%s3 + $0xc0] sm:$0xff] %vm550, %v510
  %576 = vst.msk [vmem:[%s3 + $0xc8] sm:$0xff] %vm550, %v511
  %577 = vst.msk [vmem:[%s3 + $0xd0] sm:$0xff] %vm550, %v512
  %578 = vst.msk [vmem:[%s3 + $0xd8] sm:$0xff] %vm550, %v513
  %579 = vst.msk [vmem:[%s3 + $0xe0] sm:$0xff] %vm550, %v514
  %580 = vst.msk [vmem:[%s3 + $0xe8] sm:$0xff] %vm550, %v515
  %581 = vst.msk [vmem:[%s3 + $0xf0] sm:$0xff] %vm550, %v516
  %582 = vst.msk [vmem:[%s3 + $0xf8] sm:$0xff] %vm550, %v517
  %583 = vst.msk [vmem:[%s3 + $0x100] sm:$0xff] %vm550, %v518
  %584 = vst.msk [vmem:[%s3 + $0x108] sm:$0xff] %vm550, %v519
  %585 = vst.msk [vmem:[%s3 + $0x110] sm:$0xff] %vm550, %v520
  %586 = vst.msk [vmem:[%s3 + $0x118] sm:$0xff] %vm550, %v521
  %587 = vst.msk [vmem:[%s3 + $0x120] sm:$0xff] %vm550, %v522
  %588 = vst.msk [vmem:[%s3 + $0x128] sm:$0xff] %vm550, %v523
  %589 = vst.msk [vmem:[%s3 + $0x130] sm:$0xff] %vm550, %v524
  %590 = vst.msk [vmem:[%s3 + $0x138] sm:$0xff] %vm550, %v525
  %591 = vst.msk [vmem:[%s3 + $0x140] sm:$0xff] %vm550, %v526
  %592 = vst.msk [vmem:[%s3 + $0x148] sm:$0xff] %vm550, %v527
  %593 = vst.msk [vmem:[%s3 + $0x150] sm:$0xff] %vm550, %v528
  %594 = vst.msk [vmem:[%s3 + $0x158] sm:$0xff] %vm550, %v529
  %595 = vst.msk [vmem:[%s3 + $0x160] sm:$0xff] %vm550, %v530
  %596 = vst.msk [vmem:[%s3 + $0x168] sm:$0xff] %vm550, %v531
  %597 = vst.msk [vmem:[%s3 + $0x170] sm:$0xff] %vm550, %v532
  %598 = vst.msk [vmem:[%s3 + $0x178] sm:$0xff] %vm550, %v533
  %599 = vst.msk [vmem:[%s3 + $0x180] sm:$0xff] %vm550, %v534
  %600 = vst.msk [vmem:[%s3 + $0x188] sm:$0xff] %vm550, %v535
  %601 = vst.msk [vmem:[%s3 + $0x190] sm:$0xff] %vm550, %v536
  %602 = vst.msk [vmem:[%s3 + $0x198] sm:$0xff] %vm550, %v537
  %603 = vst.msk [vmem:[%s3 + $0x1a0] sm:$0xff] %vm550, %v538
  %604 = vst.msk [vmem:[%s3 + $0x1a8] sm:$0xff] %vm550, %v539
  %605 = vst.msk [vmem:[%s3 + $0x1b0] sm:$0xff] %vm550, %v540
  %606 = vst.msk [vmem:[%s3 + $0x1b8] sm:$0xff] %vm550, %v541
  %607 = vst.msk [vmem:[%s3 + $0x1c0] sm:$0xff] %vm550, %v542
  %608 = vst.msk [vmem:[%s3 + $0x1c8] sm:$0xff] %vm550, %v543
  %609 = vst.msk [vmem:[%s3 + $0x1d0] sm:$0xff] %vm550, %v544
  %610 = vst.msk [vmem:[%s3 + $0x1d8] sm:$0xff] %vm550, %v545
  %611 = vst.msk [vmem:[%s3 + $0x1e0] sm:$0xff] %vm550, %v546
  %612 = vst.msk [vmem:[%s3 + $0x1e8] sm:$0xff] %vm550, %v547
  %613 = vst.msk [vmem:[%s3 + $0x1f0] sm:$0xff] %vm550, %v548
  %614 = vst.msk [vmem:[%s3 + $0x1f8] sm:$0xff] %vm550, %v549
  // Predicated region
  $region14: #{a2s_forward.2} parent=0 // pred_check
    _
  $region15: #{a2s_forward.2} parent=0 // pred_check_branch
    %616 = sbr.rel (0) target = $region17
  $region16: #{a2s_forward.2} parent=0 // pred_region
    _
  $region17: #{a2s_forward.2} parent=0 // pred_fallthru
    _
  // Predicated region
  $region18: #{a2s_forward.2} parent=0 // pred_check
    _
  $region19: #{a2s_forward.2} parent=0 // pred_check_branch
    %618 = sbr.rel (0) target = $region21
  $region20: #{a2s_forward.2} parent=0 // pred_region
    _
  $region21: #{a2s_forward.2} parent=0 // pred_fallthru
    _

// kernel: a2s_forward.3
$region0: #{a2s_forward.3}
  #allocation0 [shape = 'u32[]', space=smem, size = 0x4, offset = 0x4, fixed_abs, tag = 'smem constant byte address 0x4 - core index']
  #allocation1 [shape = 'u32[144,128]{1,0:T(1,128)}', space=vmem, size = 0x12000, scoped, tag = 'internal scratch']
  #allocation2 [shape = 'bf16[8,2048]{1,0:T(8,128)(2,1)}', space=vmem, size = 0x8000, scoped, tag = 'scratch operand']
  #allocation3 [shape = 'f32[8,128]{1,0:T(8,128)}', space=vmem, size = 0x1000, scoped, tag = 'scratch operand']
  %s0 = inlined_call_operand.vmem [shape: f32[2,2048], index: 0, kind: input, shape index: {}]
  %s1 = inlined_call_operand.vmem [shape: bf16[2048,128], index: 1, kind: input, shape index: {}]
  %s2 = inlined_call_operand.vmem [shape: f32[1,128], index: 2, kind: input, shape index: {}]
  %s3 = inlined_call_operand.vmem [shape: f32[128,10], index: 3, kind: input, shape index: {}]
  %s4 = inlined_call_operand.vmem [shape: f32[1,10], index: 4, kind: input, shape index: {}]
  %s5 = inlined_call_operand.hbm [shape: f32[2,10], index: 5, kind: output, shape index: {}]
  %s6 = sld [smem:[#allocation0]]
  $region30: #{a2s_forward.3} parent=0
    _
  %s8 = ssub.s32 1, %s6
  %s9 = scalar_select 0, %s8, %s6
  $region1: #{a2s_forward.3} parent=0
    #allocation4 [shape = 'u8[1024]{0}', space=vmem, size = 0x400, scoped, tag = 'output window, operand 0, single buffered']
    #allocation5 [shape = 's32[1]{0}', space=sflag, size = 0x4, scoped, tag = 'scoped memory for a2s_forward.3']
    %10 = vsyncpa [#allocation5], 0
    // Predicated region
    $region2: #{a2s_forward.3} parent=1 // pred_check
      _
    $region3: #{a2s_forward.3} parent=1 // pred_check_branch
      %12 = sbr.rel (0) target = $region5
    $region4: #{a2s_forward.3} parent=1 // pred_region
      _
    $region5: #{a2s_forward.3} parent=1 // pred_fallthru
      _
    // Predicated region
    $region6: #{a2s_forward.3} parent=1 // pred_check
      _
    $region7: #{a2s_forward.3} parent=1 // pred_check_branch
      %14 = sbr.rel (0) target = $region9
    $region8: #{a2s_forward.3} parent=1 // pred_region
      _
    $region9: #{a2s_forward.3} parent=1 // pred_fallthru
      _
    // Predicated region
    $region10: #{a2s_forward.3} parent=1 // pred_check
      _
    $region11: #{a2s_forward.3} parent=1 // pred_check_branch
      %16 = sbr.rel (0) target = $region13
    $region12: #{a2s_forward.3} parent=1 // pred_region
      _
    $region13: #{a2s_forward.3} parent=1 // pred_fallthru
      _
    // Predicated region
    $region14: #{a2s_forward.3} parent=1 // pred_check
      _
    $region15: #{a2s_forward.3} parent=1 // pred_check_branch
      %18 = sbr.rel (0) target = $region17
    $region16: #{a2s_forward.3} parent=1 // pred_region
      _
    $region17: #{a2s_forward.3} parent=1 // pred_fallthru
      _
    // Predicated region
    $region18: #{a2s_forward.3} parent=1 // pred_check
      _
    $region19: #{a2s_forward.3} parent=1 // pred_check_branch
      %20 = sbr.rel (0) target = $region21
    $region20: #{a2s_forward.3} parent=1 // pred_region
      _
    $region21: #{a2s_forward.3} parent=1 // pred_fallthru
      _
    %v22 = vld [vmem:[%s0] sm:$0xff]
    %v23 = vld [vmem:[%s0 + $0x8] sm:$0xff]
    %v24 = vld [vmem:[%s0 + $0x10] sm:$0xff]
    %v25 = vld [vmem:[%s0 + $0x18] sm:$0xff]
    %v26 = vmax.f32 %v22, 0.0
    %v27 = vmax.f32 %v23, 0.0
    %v28 = vmax.f32 %v24, 0.0
    %v29 = vmax.f32 %v25, 0.0
    %v30 = vmin.f32 %v26, 1.0
    %v31 = vmin.f32 %v27, 1.0
    %v32 = vmin.f32 %v28, 1.0
    %v33 = vmin.f32 %v29, 1.0
    %vm34 = vcmp.ge.f32.partialorder %v30, 0.125
    %vm35 = vcmp.ge.f32.partialorder %v31, 0.125
    %vm36 = vcmp.ge.f32.partialorder %v32, 0.125
    %vm37 = vcmp.ge.f32.partialorder %v33, 0.125
    %v38 = vsel %vm34, 1, 0
    %v39 = vsel %vm35, 1, 0
    %v40 = vsel %vm36, 1, 0
    %v41 = vsel %vm37, 1, 0
    %v42 = vcvt.s32.f32 %v38
    %v43 = vcvt.s32.f32 %v39
    %v44 = vcvt.s32.f32 %v40
    %v45 = vcvt.s32.f32 %v41
    %v50 = vcombine.high %v42, %v42
    %v52 = vunpack.c.l.s4 1983009808
    %v53 = vunpack.c.0.s8 %v52
    %v54 = vlaneseq
    %v55 = vshrl.u32 %v54, 7
    %v56 = vsub.s32 %v53, %v55
    %v57 = vrot.slane %v42, %v56
    %v59 = vunpack.c.l.s4 1983009808
    %v60 = vunpack.c.0.s8 %v59
    %v61 = vlaneseq
    %v62 = vshrl.u32 %v61, 7
    %v63 = vsub.s32 %v60, %v62
    %v64 = vrot.slane %v50, %v63
    %v65 = vcombine.high %v57, %v57
    %v66 = vcombine.high %v64, %v64
    %v67 = vcombine.high %v43, %v43
    %v69 = vunpack.c.l.s4 1983009808
    %v70 = vunpack.c.0.s8 %v69
    %v71 = vlaneseq
    %v72 = vshrl.u32 %v71, 7
    %v73 = vsub.s32 %v70, %v72
    %v74 = vrot.slane %v43, %v73
    %v76 = vunpack.c.l.s4 1983009808
    %v77 = vunpack.c.0.s8 %v76
    %v78 = vlaneseq
    %v79 = vshrl.u32 %v78, 7
    %v80 = vsub.s32 %v77, %v79
    %v81 = vrot.slane %v67, %v80
    %v82 = vcombine.high %v74, %v74
    %v83 = vcombine.high %v81, %v81
    %v84 = vcombine.high %v44, %v44
    %v86 = vunpack.c.l.s4 1983009808
    %v87 = vunpack.c.0.s8 %v86
    %v88 = vlaneseq
    %v89 = vshrl.u32 %v88, 7
    %v90 = vsub.s32 %v87, %v89
    %v91 = vrot.slane %v44, %v90
    %v93 = vunpack.c.l.s4 1983009808
    %v94 = vunpack.c.0.s8 %v93
    %v95 = vlaneseq
    %v96 = vshrl.u32 %v95, 7
    %v97 = vsub.s32 %v94, %v96
    %v98 = vrot.slane %v84, %v97
    %v99 = vcombine.high %v91, %v91
    %v100 = vcombine.high %v98, %v98
    %v101 = vcombine.high %v45, %v45
    %v103 = vunpack.c.l.s4 1983009808
    %v104 = vunpack.c.0.s8 %v103
    %v105 = vlaneseq
    %v106 = vshrl.u32 %v105, 7
    %v107 = vsub.s32 %v104, %v106
    %v108 = vrot.slane %v45, %v107
    %v110 = vunpack.c.l.s4 1983009808
    %v111 = vunpack.c.0.s8 %v110
    %v112 = vlaneseq
    %v113 = vshrl.u32 %v112, 7
    %v114 = vsub.s32 %v111, %v113
    %v115 = vrot.slane %v101, %v114
    %v116 = vcombine.high %v108, %v108
    %v117 = vcombine.high %v115, %v115
    %v134 = vpack.c.bf16 %v57, %v57
    %v135 = vpack.c.bf16 %v65, %v65
    %v136 = vpack.c.bf16 %v64, %v64
    %v137 = vpack.c.bf16 %v66, %v66
    %v138 = vpack.c.bf16 %v74, %v74
    %v139 = vpack.c.bf16 %v82, %v82
    %v140 = vpack.c.bf16 %v81, %v81
    %v141 = vpack.c.bf16 %v83, %v83
    %v142 = vpack.c.bf16 %v91, %v91
    %v143 = vpack.c.bf16 %v99, %v99
    %v144 = vpack.c.bf16 %v98, %v98
    %v145 = vpack.c.bf16 %v100, %v100
    %v146 = vpack.c.bf16 %v108, %v108
    %v147 = vpack.c.bf16 %v116, %v116
    %v148 = vpack.c.bf16 %v115, %v115
    %v149 = vpack.c.bf16 %v117, %v117
    %v166 = vunpack.c.l.b16 %v134
    %v167 = vunpack.c.l.b16 %v135
    %v168 = vunpack.c.l.b16 %v136
    %v169 = vunpack.c.l.b16 %v137
    %v170 = vunpack.c.l.b16 %v138
    %v171 = vunpack.c.l.b16 %v139
    %v172 = vunpack.c.l.b16 %v140
    %v173 = vunpack.c.l.b16 %v141
    %v174 = vunpack.c.l.b16 %v142
    %v175 = vunpack.c.l.b16 %v143
    %v176 = vunpack.c.l.b16 %v144
    %v177 = vunpack.c.l.b16 %v145
    %v178 = vunpack.c.l.b16 %v146
    %v179 = vunpack.c.l.b16 %v147
    %v180 = vunpack.c.l.b16 %v148
    %v181 = vunpack.c.l.b16 %v149
    %v182 = vpack.c.b16 %v167, %v166
    %v183 = vpack.c.b16 %v169, %v168
    %v184 = vpack.c.b16 %v171, %v170
    %v185 = vpack.c.b16 %v173, %v172
    %v186 = vpack.c.b16 %v175, %v174
    %v187 = vpack.c.b16 %v177, %v176
    %v188 = vpack.c.b16 %v179, %v178
    %v189 = vpack.c.b16 %v181, %v180
    %198 = vst [vmem:[#allocation2] sm:$0x11] %v182
    %199 = vst [vmem:[#allocation2 + $0x8] sm:$0x11] %v183
    %200 = vst [vmem:[#allocation2 + $0x10] sm:$0x11] %v184
    %201 = vst [vmem:[#allocation2 + $0x18] sm:$0x11] %v185
    %202 = vst [vmem:[#allocation2 + $0x20] sm:$0x11] %v186
    %203 = vst [vmem:[#allocation2 + $0x28] sm:$0x11] %v187
    %204 = vst [vmem:[#allocation2 + $0x30] sm:$0x11] %v188
    %205 = vst [vmem:[#allocation2 + $0x38] sm:$0x11] %v189
    %vm206 = vcmp.ge.f32.partialorder %v30, 0.375
    %vm207 = vcmp.ge.f32.partialorder %v31, 0.375
    %vm208 = vcmp.ge.f32.partialorder %v32, 0.375
    %vm209 = vcmp.ge.f32.partialorder %v33, 0.375
    %v210 = vsel %vm206, 1, 0
    %v211 = vsel %vm207, 1, 0
    %v212 = vsel %vm208, 1, 0
    %v213 = vsel %vm209, 1, 0
    %v214 = vcvt.s32.f32 %v210
    %v215 = vcvt.s32.f32 %v211
    %v216 = vcvt.s32.f32 %v212
    %v217 = vcvt.s32.f32 %v213
    %v222 = vcombine.high %v214, %v214
    %v224 = vunpack.c.l.s4 1983009808
    %v225 = vunpack.c.0.s8 %v224
    %v226 = vlaneseq
    %v227 = vshrl.u32 %v226, 7
    %v228 = vsub.s32 %v225, %v227
    %v229 = vrot.slane %v214, %v228
    %v231 = vunpack.c.l.s4 1983009808
    %v232 = vunpack.c.0.s8 %v231
    %v233 = vlaneseq
    %v234 = vshrl.u32 %v233, 7
    %v235 = vsub.s32 %v232, %v234
    %v236 = vrot.slane %v222, %v235
    %v237 = vcombine.high %v229, %v229
    %v238 = vcombine.high %v236, %v236
    %v239 = vcombine.high %v215, %v215
    %v241 = vunpack.c.l.s4 1983009808
    %v242 = vunpack.c.0.s8 %v241
    %v243 = vlaneseq
    %v244 = vshrl.u32 %v243, 7
    %v245 = vsub.s32 %v242, %v244
    %v246 = vrot.slane %v215, %v245
    %v248 = vunpack.c.l.s4 1983009808
    %v249 = vunpack.c.0.s8 %v248
    %v250 = vlaneseq
    %v251 = vshrl.u32 %v250, 7
    %v252 = vsub.s32 %v249, %v251
    %v253 = vrot.slane %v239, %v252
    %v254 = vcombine.high %v246, %v246
    %v255 = vcombine.high %v253, %v253
    %v256 = vcombine.high %v216, %v216
    %v258 = vunpack.c.l.s4 1983009808
    %v259 = vunpack.c.0.s8 %v258
    %v260 = vlaneseq
    %v261 = vshrl.u32 %v260, 7
    %v262 = vsub.s32 %v259, %v261
    %v263 = vrot.slane %v216, %v262
    %v265 = vunpack.c.l.s4 1983009808
    %v266 = vunpack.c.0.s8 %v265
    %v267 = vlaneseq
    %v268 = vshrl.u32 %v267, 7
    %v269 = vsub.s32 %v266, %v268
    %v270 = vrot.slane %v256, %v269
    %v271 = vcombine.high %v263, %v263
    %v272 = vcombine.high %v270, %v270
    %v273 = vcombine.high %v217, %v217
    %v275 = vunpack.c.l.s4 1983009808
    %v276 = vunpack.c.0.s8 %v275
    %v277 = vlaneseq
    %v278 = vshrl.u32 %v277, 7
    %v279 = vsub.s32 %v276, %v278
    %v280 = vrot.slane %v217, %v279
    %v282 = vunpack.c.l.s4 1983009808
    %v283 = vunpack.c.0.s8 %v282
    %v284 = vlaneseq
    %v285 = vshrl.u32 %v284, 7
    %v286 = vsub.s32 %v283, %v285
    %v287 = vrot.slane %v273, %v286
    %v288 = vcombine.high %v280, %v280
    %v289 = vcombine.high %v287, %v287
    %v306 = vpack.c.bf16 %v229, %v229
    %v307 = vpack.c.bf16 %v237, %v237
    %v308 = vpack.c.bf16 %v236, %v236
    %v309 = vpack.c.bf16 %v238, %v238
    %v310 = vpack.c.bf16 %v246, %v246
    %v311 = vpack.c.bf16 %v254, %v254
    %v312 = vpack.c.bf16 %v253, %v253
    %v313 = vpack.c.bf16 %v255, %v255
    %v314 = vpack.c.bf16 %v263, %v263
    %v315 = vpack.c.bf16 %v271, %v271
    %v316 = vpack.c.bf16 %v270, %v270
    %v317 = vpack.c.bf16 %v272, %v272
    %v318 = vpack.c.bf16 %v280, %v280
    %v319 = vpack.c.bf16 %v288, %v288
    %v320 = vpack.c.bf16 %v287, %v287
    %v321 = vpack.c.bf16 %v289, %v289
    %v338 = vunpack.c.l.b16 %v306
    %v339 = vunpack.c.l.b16 %v307
    %v340 = vunpack.c.l.b16 %v308
    %v341 = vunpack.c.l.b16 %v309
    %v342 = vunpack.c.l.b16 %v310
    %v343 = vunpack.c.l.b16 %v311
    %v344 = vunpack.c.l.b16 %v312
    %v345 = vunpack.c.l.b16 %v313
    %v346 = vunpack.c.l.b16 %v314
    %v347 = vunpack.c.l.b16 %v315
    %v348 = vunpack.c.l.b16 %v316
    %v349 = vunpack.c.l.b16 %v317
    %v350 = vunpack.c.l.b16 %v318
    %v351 = vunpack.c.l.b16 %v319
    %v352 = vunpack.c.l.b16 %v320
    %v353 = vunpack.c.l.b16 %v321
    %v354 = vpack.c.b16 %v339, %v338
    %v355 = vpack.c.b16 %v341, %v340
    %v356 = vpack.c.b16 %v343, %v342
    %v357 = vpack.c.b16 %v345, %v344
    %v358 = vpack.c.b16 %v347, %v346
    %v359 = vpack.c.b16 %v349, %v348
    %v360 = vpack.c.b16 %v351, %v350
    %v361 = vpack.c.b16 %v353, %v352
    %v362 = vrot.slane %v354, 7
    %v363 = vrot.slane %v355, 7
    %v364 = vrot.slane %v356, 7
    %v365 = vrot.slane %v357, 7
    %v366 = vrot.slane %v358, 7
    %v367 = vrot.slane %v359, 7
    %v368 = vrot.slane %v360, 7
    %v369 = vrot.slane %v361, 7
    %378 = vst [vmem:[#allocation2] sm:$0x22] %v362
    %379 = vst [vmem:[#allocation2 + $0x8] sm:$0x22] %v363
    %380 = vst [vmem:[#allocation2 + $0x10] sm:$0x22] %v364
    %381 = vst [vmem:[#allocation2 + $0x18] sm:$0x22] %v365
    %382 = vst [vmem:[#allocation2 + $0x20] sm:$0x22] %v366
    %383 = vst [vmem:[#allocation2 + $0x28] sm:$0x22] %v367
    %384 = vst [vmem:[#allocation2 + $0x30] sm:$0x22] %v368
    %385 = vst [vmem:[#allocation2 + $0x38] sm:$0x22] %v369
    %vm386 = vcmp.ge.f32.partialorder %v30, 0.625
    %vm387 = vcmp.ge.f32.partialorder %v31, 0.625
    %vm388 = vcmp.ge.f32.partialorder %v32, 0.625
    %vm389 = vcmp.ge.f32.partialorder %v33, 0.625
    %v390 = vsel %vm386, 1, 0
    %v391 = vsel %vm387, 1, 0
    %v392 = vsel %vm388, 1, 0
    %v393 = vsel %vm389, 1, 0
    %v394 = vcvt.s32.f32 %v390
    %v395 = vcvt.s32.f32 %v391
    %v396 = vcvt.s32.f32 %v392
    %v397 = vcvt.s32.f32 %v393
    %v402 = vcombine.high %v394, %v394
    %v404 = vunpack.c.l.s4 1983009808
    %v405 = vunpack.c.0.s8 %v404
    %v406 = vlaneseq
    %v407 = vshrl.u32 %v406, 7
    %v408 = vsub.s32 %v405, %v407
    %v409 = vrot.slane %v394, %v408
    %v411 = vunpack.c.l.s4 1983009808
    %v412 = vunpack.c.0.s8 %v411
    %v413 = vlaneseq
    %v414 = vshrl.u32 %v413, 7
    %v415 = vsub.s32 %v412, %v414
    %v416 = vrot.slane %v402, %v415
    %v417 = vcombine.high %v409, %v409
    %v418 = vcombine.high %v416, %v416
    %v419 = vcombine.high %v395, %v395
    %v421 = vunpack.c.l.s4 1983009808
    %v422 = vunpack.c.0.s8 %v421
    %v423 = vlaneseq
    %v424 = vshrl.u32 %v423, 7
    %v425 = vsub.s32 %v422, %v424
    %v426 = vrot.slane %v395, %v425
    %v428 = vunpack.c.l.s4 1983009808
    %v429 = vunpack.c.0.s8 %v428
    %v430 = vlaneseq
    %v431 = vshrl.u32 %v430, 7
    %v432 = vsub.s32 %v429, %v431
    %v433 = vrot.slane %v419, %v432
    %v434 = vcombine.high %v426, %v426
    %v435 = vcombine.high %v433, %v433
    %v436 = vcombine.high %v396, %v396
    %v438 = vunpack.c.l.s4 1983009808
    %v439 = vunpack.c.0.s8 %v438
    %v440 = vlaneseq
    %v441 = vshrl.u32 %v440, 7
    %v442 = vsub.s32 %v439, %v441
    %v443 = vrot.slane %v396, %v442
    %v445 = vunpack.c.l.s4 1983009808
    %v446 = vunpack.c.0.s8 %v445
    %v447 = vlaneseq
    %v448 = vshrl.u32 %v447, 7
    %v449 = vsub.s32 %v446, %v448
    %v450 = vrot.slane %v436, %v449
    %v451 = vcombine.high %v443, %v443
    %v452 = vcombine.high %v450, %v450
    %v453 = vcombine.high %v397, %v397
    %v455 = vunpack.c.l.s4 1983009808
    %v456 = vunpack.c.0.s8 %v455
    %v457 = vlaneseq
    %v458 = vshrl.u32 %v457, 7
    %v459 = vsub.s32 %v456, %v458
    %v460 = vrot.slane %v397, %v459
    %v462 = vunpack.c.l.s4 1983009808
    %v463 = vunpack.c.0.s8 %v462
    %v464 = vlaneseq
    %v465 = vshrl.u32 %v464, 7
    %v466 = vsub.s32 %v463, %v465
    %v467 = vrot.slane %v453, %v466
    %v468 = vcombine.high %v460, %v460
    %v469 = vcombine.high %v467, %v467
    %v486 = vpack.c.bf16 %v409, %v409
    %v487 = vpack.c.bf16 %v417, %v417
    %v488 = vpack.c.bf16 %v416, %v416
    %v489 = vpack.c.bf16 %v418, %v418
    %v490 = vpack.c.bf16 %v426, %v426
    %v491 = vpack.c.bf16 %v434, %v434
    %v492 = vpack.c.bf16 %v433, %v433
    %v493 = vpack.c.bf16 %v435, %v435
    %v494 = vpack.c.bf16 %v443, %v443
    %v495 = vpack.c.bf16 %v451, %v451
    %v496 = vpack.c.bf16 %v450, %v450
    %v497 = vpack.c.bf16 %v452, %v452
    %v498 = vpack.c.bf16 %v460, %v460
    %v499 = vpack.c.bf16 %v468, %v468
    %v500 = vpack.c.bf16 %v467, %v467
    %v501 = vpack.c.bf16 %v469, %v469
    %v518 = vunpack.c.l.b16 %v486
    %v519 = vunpack.c.l.b16 %v487
    %v520 = vunpack.c.l.b16 %v488
    %v521 = vunpack.c.l.b16 %v489
    %v522 = vunpack.c.l.b16 %v490
    %v523 = vunpack.c.l.b16 %v491
    %v524 = vunpack.c.l.b16 %v492
    %v525 = vunpack.c.l.b16 %v493
    %v526 = vunpack.c.l.b16 %v494
    %v527 = vunpack.c.l.b16 %v495
    %v528 = vunpack.c.l.b16 %v496
    %v529 = vunpack.c.l.b16 %v497
    %v530 = vunpack.c.l.b16 %v498
    %v531 = vunpack.c.l.b16 %v499
    %v532 = vunpack.c.l.b16 %v500
    %v533 = vunpack.c.l.b16 %v501
    %v534 = vpack.c.b16 %v519, %v518
    %v535 = vpack.c.b16 %v521, %v520
    %v536 = vpack.c.b16 %v523, %v522
    %v537 = vpack.c.b16 %v525, %v524
    %v538 = vpack.c.b16 %v527, %v526
    %v539 = vpack.c.b16 %v529, %v528
    %v540 = vpack.c.b16 %v531, %v530
    %v541 = vpack.c.b16 %v533, %v532
    %v542 = vrot.slane %v534, 6
    %v543 = vrot.slane %v535, 6
    %v544 = vrot.slane %v536, 6
    %v545 = vrot.slane %v537, 6
    %v546 = vrot.slane %v538, 6
    %v547 = vrot.slane %v539, 6
    %v548 = vrot.slane %v540, 6
    %v549 = vrot.slane %v541, 6
    %558 = vst [vmem:[#allocation2] sm:$0x44] %v542
    %559 = vst [vmem:[#allocation2 + $0x8] sm:$0x44] %v543
    %560 = vst [vmem:[#allocation2 + $0x10] sm:$0x44] %v544
    %561 = vst [vmem:[#allocation2 + $0x18] sm:$0x44] %v545
    %562 = vst [vmem:[#allocation2 + $0x20] sm:$0x44] %v546
    %563 = vst [vmem:[#allocation2 + $0x28] sm:$0x44] %v547
    %564 = vst [vmem:[#allocation2 + $0x30] sm:$0x44] %v548
    %565 = vst [vmem:[#allocation2 + $0x38] sm:$0x44] %v549
    %vm566 = vcmp.ge.f32.partialorder %v30, 0.875
    %vm567 = vcmp.ge.f32.partialorder %v31, 0.875
    %vm568 = vcmp.ge.f32.partialorder %v32, 0.875
    %vm569 = vcmp.ge.f32.partialorder %v33, 0.875
    %v570 = vsel %vm566, 1, 0
    %v571 = vsel %vm567, 1, 0
    %v572 = vsel %vm568, 1, 0
    %v573 = vsel %vm569, 1, 0
    %v574 = vcvt.s32.f32 %v570
    %v575 = vcvt.s32.f32 %v571
    %v576 = vcvt.s32.f32 %v572
    %v577 = vcvt.s32.f32 %v573
    %v582 = vcombine.high %v574, %v574
    %v584 = vunpack.c.l.s4 1983009808
    %v585 = vunpack.c.0.s8 %v584
    %v586 = vlaneseq
    %v587 = vshrl.u32 %v586, 7
    %v588 = vsub.s32 %v585, %v587
    %v589 = vrot.slane %v574, %v588
    %v591 = vunpack.c.l.s4 1983009808
    %v592 = vunpack.c.0.s8 %v591
    %v593 = vlaneseq
    %v594 = vshrl.u32 %v593, 7
    %v595 = vsub.s32 %v592, %v594
    %v596 = vrot.slane %v582, %v595
    %v597 = vcombine.high %v589, %v589
    %v598 = vcombine.high %v596, %v596
    %v599 = vcombine.high %v575, %v575
    %v601 = vunpack.c.l.s4 1983009808
    %v602 = vunpack.c.0.s8 %v601
    %v603 = vlaneseq
    %v604 = vshrl.u32 %v603, 7
    %v605 = vsub.s32 %v602, %v604
    %v606 = vrot.slane %v575, %v605
    %v608 = vunpack.c.l.s4 1983009808
    %v609 = vunpack.c.0.s8 %v608
    %v610 = vlaneseq
    %v611 = vshrl.u32 %v610, 7
    %v612 = vsub.s32 %v609, %v611
    %v613 = vrot.slane %v599, %v612
    %v614 = vcombine.high %v606, %v606
    %v615 = vcombine.high %v613, %v613
    %v616 = vcombine.high %v576, %v576
    %v618 = vunpack.c.l.s4 1983009808
    %v619 = vunpack.c.0.s8 %v618
    %v620 = vlaneseq
    %v621 = vshrl.u32 %v620, 7
    %v622 = vsub.s32 %v619, %v621
    %v623 = vrot.slane %v576, %v622
    %v625 = vunpack.c.l.s4 1983009808
    %v626 = vunpack.c.0.s8 %v625
    %v627 = vlaneseq
    %v628 = vshrl.u32 %v627, 7
    %v629 = vsub.s32 %v626, %v628
    %v630 = vrot.slane %v616, %v629
    %v631 = vcombine.high %v623, %v623
    %v632 = vcombine.high %v630, %v630
    %v633 = vcombine.high %v577, %v577
    %v635 = vunpack.c.l.s4 1983009808
    %v636 = vunpack.c.0.s8 %v635
    %v637 = vlaneseq
    %v638 = vshrl.u32 %v637, 7
    %v639 = vsub.s32 %v636, %v638
    %v640 = vrot.slane %v577, %v639
    %v642 = vunpack.c.l.s4 1983009808
    %v643 = vunpack.c.0.s8 %v642
    %v644 = vlaneseq
    %v645 = vshrl.u32 %v644, 7
    %v646 = vsub.s32 %v643, %v645
    %v647 = vrot.slane %v633, %v646
    %v648 = vcombine.high %v640, %v640
    %v649 = vcombine.high %v647, %v647
    %v666 = vpack.c.bf16 %v589, %v589
    %v667 = vpack.c.bf16 %v597, %v597
    %v668 = vpack.c.bf16 %v596, %v596
    %v669 = vpack.c.bf16 %v598, %v598
    %v670 = vpack.c.bf16 %v606, %v606
    %v671 = vpack.c.bf16 %v614, %v614
    %v672 = vpack.c.bf16 %v613, %v613
    %v673 = vpack.c.bf16 %v615, %v615
    %v674 = vpack.c.bf16 %v623, %v623
    %v675 = vpack.c.bf16 %v631, %v631
    %v676 = vpack.c.bf16 %v630, %v630
    %v677 = vpack.c.bf16 %v632, %v632
    %v678 = vpack.c.bf16 %v640, %v640
    %v679 = vpack.c.bf16 %v648, %v648
    %v680 = vpack.c.bf16 %v647, %v647
    %v681 = vpack.c.bf16 %v649, %v649
    %v698 = vunpack.c.l.b16 %v666
    %v699 = vunpack.c.l.b16 %v667
    %v700 = vunpack.c.l.b16 %v668
    %v701 = vunpack.c.l.b16 %v669
    %v702 = vunpack.c.l.b16 %v670
    %v703 = vunpack.c.l.b16 %v671
    %v704 = vunpack.c.l.b16 %v672
    %v705 = vunpack.c.l.b16 %v673
    %v706 = vunpack.c.l.b16 %v674
    %v707 = vunpack.c.l.b16 %v675
    %v708 = vunpack.c.l.b16 %v676
    %v709 = vunpack.c.l.b16 %v677
    %v710 = vunpack.c.l.b16 %v678
    %v711 = vunpack.c.l.b16 %v679
    %v712 = vunpack.c.l.b16 %v680
    %v713 = vunpack.c.l.b16 %v681
    %v714 = vpack.c.b16 %v699, %v698
    %v715 = vpack.c.b16 %v701, %v700
    %v716 = vpack.c.b16 %v703, %v702
    %v717 = vpack.c.b16 %v705, %v704
    %v718 = vpack.c.b16 %v707, %v706
    %v719 = vpack.c.b16 %v709, %v708
    %v720 = vpack.c.b16 %v711, %v710
    %v721 = vpack.c.b16 %v713, %v712
    %v722 = vrot.slane %v714, 5
    %v723 = vrot.slane %v715, 5
    %v724 = vrot.slane %v716, 5
    %v725 = vrot.slane %v717, 5
    %v726 = vrot.slane %v718, 5
    %v727 = vrot.slane %v719, 5
    %v728 = vrot.slane %v720, 5
    %v729 = vrot.slane %v721, 5
    %738 = vst [vmem:[#allocation2] sm:$0x88] %v722
    %739 = vst [vmem:[#allocation2 + $0x8] sm:$0x88] %v723
    %740 = vst [vmem:[#allocation2 + $0x10] sm:$0x88] %v724
    %741 = vst [vmem:[#allocation2 + $0x18] sm:$0x88] %v725
    %742 = vst [vmem:[#allocation2 + $0x20] sm:$0x88] %v726
    %743 = vst [vmem:[#allocation2 + $0x28] sm:$0x88] %v727
    %744 = vst [vmem:[#allocation2 + $0x30] sm:$0x88] %v728
    %745 = vst [vmem:[#allocation2 + $0x38] sm:$0x88] %v729
    %v746 = vld [vmem:[#allocation2] sm:$0xff]
    %v747 = vld [vmem:[#allocation2 + $0x8] sm:$0xff]
    %v748 = vld [vmem:[#allocation2 + $0x10] sm:$0xff]
    %v749 = vld [vmem:[#allocation2 + $0x18] sm:$0xff]
    %v750 = vld [vmem:[#allocation2 + $0x20] sm:$0xff]
    %v751 = vld [vmem:[#allocation2 + $0x28] sm:$0xff]
    %v752 = vld [vmem:[#allocation2 + $0x30] sm:$0xff]
    %v753 = vld [vmem:[#allocation2 + $0x38] sm:$0xff]
    %v754 = vld [vmem:[%s1] sm:$0xf]
    %v755 = vld [vmem:[%s1 + $0x4] sm:$0xf]
    %v756 = vld [vmem:[%s1 + $0x8] sm:$0xf]
    %v757 = vld [vmem:[%s1 + $0xc] sm:$0xf]
    %v758 = vld [vmem:[%s1 + $0x10] sm:$0xf]
    %v759 = vld [vmem:[%s1 + $0x14] sm:$0xf]
    %v760 = vld [vmem:[%s1 + $0x18] sm:$0xf]
    %v761 = vld [vmem:[%s1 + $0x1c] sm:$0xf]
    %v762 = vld [vmem:[%s1 + $0x20] sm:$0xf]
    %v763 = vld [vmem:[%s1 + $0x24] sm:$0xf]
    %v764 = vld [vmem:[%s1 + $0x28] sm:$0xf]
    %v765 = vld [vmem:[%s1 + $0x2c] sm:$0xf]
    %v766 = vld [vmem:[%s1 + $0x30] sm:$0xf]
    %v767 = vld [vmem:[%s1 + $0x34] sm:$0xf]
    %v768 = vld [vmem:[%s1 + $0x38] sm:$0xf]
    %v769 = vld [vmem:[%s1 + $0x3c] sm:$0xf]
    %v770 = vld [vmem:[%s1 + $0x40] sm:$0xf]
    %v771 = vld [vmem:[%s1 + $0x44] sm:$0xf]
    %v772 = vld [vmem:[%s1 + $0x48] sm:$0xf]
    %v773 = vld [vmem:[%s1 + $0x4c] sm:$0xf]
    %v774 = vld [vmem:[%s1 + $0x50] sm:$0xf]
    %v775 = vld [vmem:[%s1 + $0x54] sm:$0xf]
    %v776 = vld [vmem:[%s1 + $0x58] sm:$0xf]
    %v777 = vld [vmem:[%s1 + $0x5c] sm:$0xf]
    %v778 = vld [vmem:[%s1 + $0x60] sm:$0xf]
    %v779 = vld [vmem:[%s1 + $0x64] sm:$0xf]
    %v780 = vld [vmem:[%s1 + $0x68] sm:$0xf]
    %v781 = vld [vmem:[%s1 + $0x6c] sm:$0xf]
    %v782 = vld [vmem:[%s1 + $0x70] sm:$0xf]
    %v783 = vld [vmem:[%s1 + $0x74] sm:$0xf]
    %v784 = vld [vmem:[%s1 + $0x78] sm:$0xf]
    %v785 = vld [vmem:[%s1 + $0x7c] sm:$0xf]
    %v786 = vld [vmem:[%s1 + $0x80] sm:$0xf]
    %v787 = vld [vmem:[%s1 + $0x84] sm:$0xf]
    %v788 = vld [vmem:[%s1 + $0x88] sm:$0xf]
    %v789 = vld [vmem:[%s1 + $0x8c] sm:$0xf]
    %v790 = vld [vmem:[%s1 + $0x90] sm:$0xf]
    %v791 = vld [vmem:[%s1 + $0x94] sm:$0xf]
    %v792 = vld [vmem:[%s1 + $0x98] sm:$0xf]
    %v793 = vld [vmem:[%s1 + $0x9c] sm:$0xf]
    %v794 = vld [vmem:[%s1 + $0xa0] sm:$0xf]
    %v795 = vld [vmem:[%s1 + $0xa4] sm:$0xf]
    %v796 = vld [vmem:[%s1 + $0xa8] sm:$0xf]
    %v797 = vld [vmem:[%s1 + $0xac] sm:$0xf]
    %v798 = vld [vmem:[%s1 + $0xb0] sm:$0xf]
    %v799 = vld [vmem:[%s1 + $0xb4] sm:$0xf]
    %v800 = vld [vmem:[%s1 + $0xb8] sm:$0xf]
    %v801 = vld [vmem:[%s1 + $0xbc] sm:$0xf]
    %v802 = vld [vmem:[%s1 + $0xc0] sm:$0xf]
    %v803 = vld [vmem:[%s1 + $0xc4] sm:$0xf]
    %v804 = vld [vmem:[%s1 + $0xc8] sm:$0xf]
    %v805 = vld [vmem:[%s1 + $0xcc] sm:$0xf]
    %v806 = vld [vmem:[%s1 + $0xd0] sm:$0xf]
    %v807 = vld [vmem:[%s1 + $0xd4] sm:$0xf]
    %v808 = vld [vmem:[%s1 + $0xd8] sm:$0xf]
    %v809 = vld [vmem:[%s1 + $0xdc] sm:$0xf]
    %v810 = vld [vmem:[%s1 + $0xe0] sm:$0xf]
    %v811 = vld [vmem:[%s1 + $0xe4] sm:$0xf]
    %v812 = vld [vmem:[%s1 + $0xe8] sm:$0xf]
    %v813 = vld [vmem:[%s1 + $0xec] sm:$0xf]
    %v814 = vld [vmem:[%s1 + $0xf0] sm:$0xf]
    %v815 = vld [vmem:[%s1 + $0xf4] sm:$0xf]
    %v816 = vld [vmem:[%s1 + $0xf8] sm:$0xf]
    %v817 = vld [vmem:[%s1 + $0xfc] sm:$0xf]
    %v818 = vld [vmem:[%s1 + $0x100] sm:$0xf]
    %v819 = vld [vmem:[%s1 + $0x104] sm:$0xf]
    %v820 = vld [vmem:[%s1 + $0x108] sm:$0xf]
    %v821 = vld [vmem:[%s1 + $0x10c] sm:$0xf]
    %v822 = vld [vmem:[%s1 + $0x110] sm:$0xf]
    %v823 = vld [vmem:[%s1 + $0x114] sm:$0xf]
    %v824 = vld [vmem:[%s1 + $0x118] sm:$0xf]
    %v825 = vld [vmem:[%s1 + $0x11c] sm:$0xf]
    %v826 = vld [vmem:[%s1 + $0x120] sm:$0xf]
    %v827 = vld [vmem:[%s1 + $0x124] sm:$0xf]
    %v828 = vld [vmem:[%s1 + $0x128] sm:$0xf]
    %v829 = vld [vmem:[%s1 + $0x12c] sm:$0xf]
    %v830 = vld [vmem:[%s1 + $0x130] sm:$0xf]
    %v831 = vld [vmem:[%s1 + $0x134] sm:$0xf]
    %v832 = vld [vmem:[%s1 + $0x138] sm:$0xf]
    %v833 = vld [vmem:[%s1 + $0x13c] sm:$0xf]
    %v834 = vld [vmem:[%s1 + $0x140] sm:$0xf]
    %v835 = vld [vmem:[%s1 + $0x144] sm:$0xf]
    %v836 = vld [vmem:[%s1 + $0x148] sm:$0xf]
    %v837 = vld [vmem:[%s1 + $0x14c] sm:$0xf]
    %v838 = vld [vmem:[%s1 + $0x150] sm:$0xf]
    %v839 = vld [vmem:[%s1 + $0x154] sm:$0xf]
    %v840 = vld [vmem:[%s1 + $0x158] sm:$0xf]
    %v841 = vld [vmem:[%s1 + $0x15c] sm:$0xf]
    %v842 = vld [vmem:[%s1 + $0x160] sm:$0xf]
    %v843 = vld [vmem:[%s1 + $0x164] sm:$0xf]
    %v844 = vld [vmem:[%s1 + $0x168] sm:$0xf]
    %v845 = vld [vmem:[%s1 + $0x16c] sm:$0xf]
    %v846 = vld [vmem:[%s1 + $0x170] sm:$0xf]
    %v847 = vld [vmem:[%s1 + $0x174] sm:$0xf]
    %v848 = vld [vmem:[%s1 + $0x178] sm:$0xf]
    %v849 = vld [vmem:[%s1 + $0x17c] sm:$0xf]
    %v850 = vld [vmem:[%s1 + $0x180] sm:$0xf]
    %v851 = vld [vmem:[%s1 + $0x184] sm:$0xf]
    %v852 = vld [vmem:[%s1 + $0x188] sm:$0xf]
    %v853 = vld [vmem:[%s1 + $0x18c] sm:$0xf]
    %v854 = vld [vmem:[%s1 + $0x190] sm:$0xf]
    %v855 = vld [vmem:[%s1 + $0x194] sm:$0xf]
    %v856 = vld [vmem:[%s1 + $0x198] sm:$0xf]
    %v857 = vld [vmem:[%s1 + $0x19c] sm:$0xf]
    %v858 = vld [vmem:[%s1 + $0x1a0] sm:$0xf]
    %v859 = vld [vmem:[%s1 + $0x1a4] sm:$0xf]
    %v860 = vld [vmem:[%s1 + $0x1a8] sm:$0xf]
    %v861 = vld [vmem:[%s1 + $0x1ac] sm:$0xf]
    %v862 = vld [vmem:[%s1 + $0x1b0] sm:$0xf]
    %v863 = vld [vmem:[%s1 + $0x1b4] sm:$0xf]
    %v864 = vld [vmem:[%s1 + $0x1b8] sm:$0xf]
    %v865 = vld [vmem:[%s1 + $0x1bc] sm:$0xf]
    %v866 = vld [vmem:[%s1 + $0x1c0] sm:$0xf]
    %v867 = vld [vmem:[%s1 + $0x1c4] sm:$0xf]
    %v868 = vld [vmem:[%s1 + $0x1c8] sm:$0xf]
    %v869 = vld [vmem:[%s1 + $0x1cc] sm:$0xf]
    %v870 = vld [vmem:[%s1 + $0x1d0] sm:$0xf]
    %v871 = vld [vmem:[%s1 + $0x1d4] sm:$0xf]
    %v872 = vld [vmem:[%s1 + $0x1d8] sm:$0xf]
    %v873 = vld [vmem:[%s1 + $0x1dc] sm:$0xf]
    %v874 = vld [vmem:[%s1 + $0x1e0] sm:$0xf]
    %v875 = vld [vmem:[%s1 + $0x1e4] sm:$0xf]
    %v876 = vld [vmem:[%s1 + $0x1e8] sm:$0xf]
    %v877 = vld [vmem:[%s1 + $0x1ec] sm:$0xf]
    %v878 = vld [vmem:[%s1 + $0x1f0] sm:$0xf]
    %v879 = vld [vmem:[%s1 + $0x1f4] sm:$0xf]
    %v880 = vld [vmem:[%s1 + $0x1f8] sm:$0xf]
    %v881 = vld [vmem:[%s1 + $0x1fc] sm:$0xf]
    %v882 = vld [vmem:[%s1 + $0x200] sm:$0xf]
    %v883 = vld [vmem:[%s1 + $0x204] sm:$0xf]
    %v884 = vld [vmem:[%s1 + $0x208] sm:$0xf]
    %v885 = vld [vmem:[%s1 + $0x20c] sm:$0xf]
    %v886 = vld [vmem:[%s1 + $0x210] sm:$0xf]
    %v887 = vld [vmem:[%s1 + $0x214] sm:$0xf]
    %v888 = vld [vmem:[%s1 + $0x218] sm:$0xf]
    %v889 = vld [vmem:[%s1 + $0x21c] sm:$0xf]
    %v890 = vld [vmem:[%s1 + $0x220] sm:$0xf]
    %v891 = vld [vmem:[%s1 + $0x224] sm:$0xf]
    %v892 = vld [vmem:[%s1 + $0x228] sm:$0xf]
    %v893 = vld [vmem:[%s1 + $0x22c] sm:$0xf]
    %v894 = vld [vmem:[%s1 + $0x230] sm:$0xf]
    %v895 = vld [vmem:[%s1 + $0x234] sm:$0xf]
    %v896 = vld [vmem:[%s1 + $0x238] sm:$0xf]
    %v897 = vld [vmem:[%s1 + $0x23c] sm:$0xf]
    %v898 = vld [vmem:[%s1 + $0x240] sm:$0xf]
    %v899 = vld [vmem:[%s1 + $0x244] sm:$0xf]
    %v900 = vld [vmem:[%s1 + $0x248] sm:$0xf]
    %v901 = vld [vmem:[%s1 + $0x24c] sm:$0xf]
    %v902 = vld [vmem:[%s1 + $0x250] sm:$0xf]
    %v903 = vld [vmem:[%s1 + $0x254] sm:$0xf]
    %v904 = vld [vmem:[%s1 + $0x258] sm:$0xf]
    %v905 = vld [vmem:[%s1 + $0x25c] sm:$0xf]
    %v906 = vld [vmem:[%s1 + $0x260] sm:$0xf]
    %v907 = vld [vmem:[%s1 + $0x264] sm:$0xf]
    %v908 = vld [vmem:[%s1 + $0x268] sm:$0xf]
    %v909 = vld [vmem:[%s1 + $0x26c] sm:$0xf]
    %v910 = vld [vmem:[%s1 + $0x270] sm:$0xf]
    %v911 = vld [vmem:[%s1 + $0x274] sm:$0xf]
    %v912 = vld [vmem:[%s1 + $0x278] sm:$0xf]
    %v913 = vld [vmem:[%s1 + $0x27c] sm:$0xf]
    %v914 = vld [vmem:[%s1 + $0x280] sm:$0xf]
    %v915 = vld [vmem:[%s1 + $0x284] sm:$0xf]
    %v916 = vld [vmem:[%s1 + $0x288] sm:$0xf]
    %v917 = vld [vmem:[%s1 + $0x28c] sm:$0xf]
    %v918 = vld [vmem:[%s1 + $0x290] sm:$0xf]
    %v919 = vld [vmem:[%s1 + $0x294] sm:$0xf]
    %v920 = vld [vmem:[%s1 + $0x298] sm:$0xf]
    %v921 = vld [vmem:[%s1 + $0x29c] sm:$0xf]
    %v922 = vld [vmem:[%s1 + $0x2a0] sm:$0xf]
    %v923 = vld [vmem:[%s1 + $0x2a4] sm:$0xf]
    %v924 = vld [vmem:[%s1 + $0x2a8] sm:$0xf]
    %v925 = vld [vmem:[%s1 + $0x2ac] sm:$0xf]
    %v926 = vld [vmem:[%s1 + $0x2b0] sm:$0xf]
    %v927 = vld [vmem:[%s1 + $0x2b4] sm:$0xf]
    %v928 = vld [vmem:[%s1 + $0x2b8] sm:$0xf]
    %v929 = vld [vmem:[%s1 + $0x2bc] sm:$0xf]
    %v930 = vld [vmem:[%s1 + $0x2c0] sm:$0xf]
    %v931 = vld [vmem:[%s1 + $0x2c4] sm:$0xf]
    %v932 = vld [vmem:[%s1 + $0x2c8] sm:$0xf]
    %v933 = vld [vmem:[%s1 + $0x2cc] sm:$0xf]
    %v934 = vld [vmem:[%s1 + $0x2d0] sm:$0xf]
    %v935 = vld [vmem:[%s1 + $0x2d4] sm:$0xf]
    %v936 = vld [vmem:[%s1 + $0x2d8] sm:$0xf]
    %v937 = vld [vmem:[%s1 + $0x2dc] sm:$0xf]
    %v938 = vld [vmem:[%s1 + $0x2e0] sm:$0xf]
    %v939 = vld [vmem:[%s1 + $0x2e4] sm:$0xf]
    %v940 = vld [vmem:[%s1 + $0x2e8] sm:$0xf]
    %v941 = vld [vmem:[%s1 + $0x2ec] sm:$0xf]
    %v942 = vld [vmem:[%s1 + $0x2f0] sm:$0xf]
    %v943 = vld [vmem:[%s1 + $0x2f4] sm:$0xf]
    %v944 = vld [vmem:[%s1 + $0x2f8] sm:$0xf]
    %v945 = vld [vmem:[%s1 + $0x2fc] sm:$0xf]
    %v946 = vld [vmem:[%s1 + $0x300] sm:$0xf]
    %v947 = vld [vmem:[%s1 + $0x304] sm:$0xf]
    %v948 = vld [vmem:[%s1 + $0x308] sm:$0xf]
    %v949 = vld [vmem:[%s1 + $0x30c] sm:$0xf]
    %v950 = vld [vmem:[%s1 + $0x310] sm:$0xf]
    %v951 = vld [vmem:[%s1 + $0x314] sm:$0xf]
    %v952 = vld [vmem:[%s1 + $0x318] sm:$0xf]
    %v953 = vld [vmem:[%s1 + $0x31c] sm:$0xf]
    %v954 = vld [vmem:[%s1 + $0x320] sm:$0xf]
    %v955 = vld [vmem:[%s1 + $0x324] sm:$0xf]
    %v956 = vld [vmem:[%s1 + $0x328] sm:$0xf]
    %v957 = vld [vmem:[%s1 + $0x32c] sm:$0xf]
    %v958 = vld [vmem:[%s1 + $0x330] sm:$0xf]
    %v959 = vld [vmem:[%s1 + $0x334] sm:$0xf]
    %v960 = vld [vmem:[%s1 + $0x338] sm:$0xf]
    %v961 = vld [vmem:[%s1 + $0x33c] sm:$0xf]
    %v962 = vld [vmem:[%s1 + $0x340] sm:$0xf]
    %v963 = vld [vmem:[%s1 + $0x344] sm:$0xf]
    %v964 = vld [vmem:[%s1 + $0x348] sm:$0xf]
    %v965 = vld [vmem:[%s1 + $0x34c] sm:$0xf]
    %v966 = vld [vmem:[%s1 + $0x350] sm:$0xf]
    %v967 = vld [vmem:[%s1 + $0x354] sm:$0xf]
    %v968 = vld [vmem:[%s1 + $0x358] sm:$0xf]
    %v969 = vld [vmem:[%s1 + $0x35c] sm:$0xf]
    %v970 = vld [vmem:[%s1 + $0x360] sm:$0xf]
    %v971 = vld [vmem:[%s1 + $0x364] sm:$0xf]
    %v972 = vld [vmem:[%s1 + $0x368] sm:$0xf]
    %v973 = vld [vmem:[%s1 + $0x36c] sm:$0xf]
    %v974 = vld [vmem:[%s1 + $0x370] sm:$0xf]
    %v975 = vld [vmem:[%s1 + $0x374] sm:$0xf]
    %v976 = vld [vmem:[%s1 + $0x378] sm:$0xf]
    %v977 = vld [vmem:[%s1 + $0x37c] sm:$0xf]
    %v978 = vld [vmem:[%s1 + $0x380] sm:$0xf]
    %v979 = vld [vmem:[%s1 + $0x384] sm:$0xf]
    %v980 = vld [vmem:[%s1 + $0x388] sm:$0xf]
    %v981 = vld [vmem:[%s1 + $0x38c] sm:$0xf]
    %v982 = vld [vmem:[%s1 + $0x390] sm:$0xf]
    %v983 = vld [vmem:[%s1 + $0x394] sm:$0xf]
    %v984 = vld [vmem:[%s1 + $0x398] sm:$0xf]
    %v985 = vld [vmem:[%s1 + $0x39c] sm:$0xf]
    %v986 = vld [vmem:[%s1 + $0x3a0] sm:$0xf]
    %v987 = vld [vmem:[%s1 + $0x3a4] sm:$0xf]
    %v988 = vld [vmem:[%s1 + $0x3a8] sm:$0xf]
    %v989 = vld [vmem:[%s1 + $0x3ac] sm:$0xf]
    %v990 = vld [vmem:[%s1 + $0x3b0] sm:$0xf]
    %v991 = vld [vmem:[%s1 + $0x3b4] sm:$0xf]
    %v992 = vld [vmem:[%s1 + $0x3b8] sm:$0xf]
    %v993 = vld [vmem:[%s1 + $0x3bc] sm:$0xf]
    %v994 = vld [vmem:[%s1 + $0x3c0] sm:$0xf]
    %v995 = vld [vmem:[%s1 + $0x3c4] sm:$0xf]
    %v996 = vld [vmem:[%s1 + $0x3c8] sm:$0xf]
    %v997 = vld [vmem:[%s1 + $0x3cc] sm:$0xf]
    %v998 = vld [vmem:[%s1 + $0x3d0] sm:$0xf]
    %v999 = vld [vmem:[%s1 + $0x3d4] sm:$0xf]
    %v1000 = vld [vmem:[%s1 + $0x3d8] sm:$0xf]
    %v1001 = vld [vmem:[%s1 + $0x3dc] sm:$0xf]
    %v1002 = vld [vmem:[%s1 + $0x3e0] sm:$0xf]
    %v1003 = vld [vmem:[%s1 + $0x3e4] sm:$0xf]
    %v1004 = vld [vmem:[%s1 + $0x3e8] sm:$0xf]
    %v1005 = vld [vmem:[%s1 + $0x3ec] sm:$0xf]
    %v1006 = vld [vmem:[%s1 + $0x3f0] sm:$0xf]
    %v1007 = vld [vmem:[%s1 + $0x3f4] sm:$0xf]
    %v1008 = vld [vmem:[%s1 + $0x3f8] sm:$0xf]
    %v1009 = vld [vmem:[%s1 + $0x3fc] sm:$0xf]
    %v1010 = vld [vmem:[%s2] sm:$0x1]
    %v1012 = vlaneseq
    %v1013 = vshrl.u32 %v1012, 7
    %v1014 = vsub.s32 0, %v1013
    %v1015 = vrot.slane %v1010, %v1014
    %v1025 = vunpack.c.l.b16 %v746
    %v1026 = vunpack.c.h.b16 %v746
    %v1027 = vunpack.c.l.b16 %v747
    %v1028 = vunpack.c.h.b16 %v747
    %v1029 = vunpack.c.l.b16 %v748
    %v1030 = vunpack.c.h.b16 %v748
    %v1031 = vunpack.c.l.b16 %v749
    %v1032 = vunpack.c.h.b16 %v749
    %v1033 = vunpack.c.l.b16 %v750
    %v1034 = vunpack.c.h.b16 %v750
    %v1035 = vunpack.c.l.b16 %v751
    %v1036 = vunpack.c.h.b16 %v751
    %v1037 = vunpack.c.l.b16 %v752
    %v1038 = vunpack.c.h.b16 %v752
    %v1039 = vunpack.c.l.b16 %v753
    %v1040 = vunpack.c.h.b16 %v753
    %v1041 = vpack.c.b16 %v1025, %v1025
    %v1042 = vpack.c.b16 %v1026, %v1026
    %v1043 = vpack.c.b16 %v1027, %v1027
    %v1044 = vpack.c.b16 %v1028, %v1028
    %v1045 = vpack.c.b16 %v1029, %v1029
    %v1046 = vpack.c.b16 %v1030, %v1030
    %v1047 = vpack.c.b16 %v1031, %v1031
    %v1048 = vpack.c.b16 %v1032, %v1032
    %v1049 = vpack.c.b16 %v1033, %v1033
    %v1050 = vpack.c.b16 %v1034, %v1034
    %v1051 = vpack.c.b16 %v1035, %v1035
    %v1052 = vpack.c.b16 %v1036, %v1036
    %v1053 = vpack.c.b16 %v1037, %v1037
    %v1054 = vpack.c.b16 %v1038, %v1038
    %v1055 = vpack.c.b16 %v1039, %v1039
    %v1056 = vpack.c.b16 %v1040, %v1040
    %v1329 = vunpack.c.l.b16 %v754
    %v1330 = vunpack.c.l.b16 %v755
    %v1331 = vunpack.c.l.b16 %v756
    %v1332 = vunpack.c.l.b16 %v757
    %v1333 = vunpack.c.l.b16 %v758
    %v1334 = vunpack.c.l.b16 %v759
    %v1335 = vunpack.c.l.b16 %v760
    %v1336 = vunpack.c.l.b16 %v761
    %v1337 = vunpack.c.l.b16 %v762
    %v1338 = vunpack.c.l.b16 %v763
    %v1339 = vunpack.c.l.b16 %v764
    %v1340 = vunpack.c.l.b16 %v765
    %v1341 = vunpack.c.l.b16 %v766
    %v1342 = vunpack.c.l.b16 %v767
    %v1343 = vunpack.c.l.b16 %v768
    %v1344 = vunpack.c.l.b16 %v769
    %v1345 = vunpack.c.l.b16 %v770
    %v1346 = vunpack.c.l.b16 %v771
    %v1347 = vunpack.c.l.b16 %v772
    %v1348 = vunpack.c.l.b16 %v773
    %v1349 = vunpack.c.l.b16 %v774
    %v1350 = vunpack.c.l.b16 %v775
    %v1351 = vunpack.c.l.b16 %v776
    %v1352 = vunpack.c.l.b16 %v777
    %v1353 = vunpack.c.l.b16 %v778
    %v1354 = vunpack.c.l.b16 %v779
    %v1355 = vunpack.c.l.b16 %v780
    %v1356 = vunpack.c.l.b16 %v781
    %v1357 = vunpack.c.l.b16 %v782
    %v1358 = vunpack.c.l.b16 %v783
    %v1359 = vunpack.c.l.b16 %v784
    %v1360 = vunpack.c.l.b16 %v785
    %v1361 = vunpack.c.l.b16 %v786
    %v1362 = vunpack.c.l.b16 %v787
    %v1363 = vunpack.c.l.b16 %v788
    %v1364 = vunpack.c.l.b16 %v789
    %v1365 = vunpack.c.l.b16 %v790
    %v1366 = vunpack.c.l.b16 %v791
    %v1367 = vunpack.c.l.b16 %v792
    %v1368 = vunpack.c.l.b16 %v793
    %v1369 = vunpack.c.l.b16 %v794
    %v1370 = vunpack.c.l.b16 %v795
    %v1371 = vunpack.c.l.b16 %v796
    %v1372 = vunpack.c.l.b16 %v797
    %v1373 = vunpack.c.l.b16 %v798
    %v1374 = vunpack.c.l.b16 %v799
    %v1375 = vunpack.c.l.b16 %v800
    %v1376 = vunpack.c.l.b16 %v801
    %v1377 = vunpack.c.l.b16 %v802
    %v1378 = vunpack.c.l.b16 %v803
    %v1379 = vunpack.c.l.b16 %v804
    %v1380 = vunpack.c.l.b16 %v805
    %v1381 = vunpack.c.l.b16 %v806
    %v1382 = vunpack.c.l.b16 %v807
    %v1383 = vunpack.c.l.b16 %v808
    %v1384 = vunpack.c.l.b16 %v809
    %v1385 = vunpack.c.l.b16 %v810
    %v1386 = vunpack.c.l.b16 %v811
    %v1387 = vunpack.c.l.b16 %v812
    %v1388 = vunpack.c.l.b16 %v813
    %v1389 = vunpack.c.l.b16 %v814
    %v1390 = vunpack.c.l.b16 %v815
    %v1391 = vunpack.c.l.b16 %v816
    %v1392 = vunpack.c.l.b16 %v817
    %v1393 = vunpack.c.l.b16 %v818
    %v1394 = vunpack.c.l.b16 %v819
    %v1395 = vunpack.c.l.b16 %v820
    %v1396 = vunpack.c.l.b16 %v821
    %v1397 = vunpack.c.l.b16 %v822
    %v1398 = vunpack.c.l.b16 %v823
    %v1399 = vunpack.c.l.b16 %v824
    %v1400 = vunpack.c.l.b16 %v825
    %v1401 = vunpack.c.l.b16 %v826
    %v1402 = vunpack.c.l.b16 %v827
    %v1403 = vunpack.c.l.b16 %v828
    %v1404 = vunpack.c.l.b16 %v829
    %v1405 = vunpack.c.l.b16 %v830
    %v1406 = vunpack.c.l.b16 %v831
    %v1407 = vunpack.c.l.b16 %v832
    %v1408 = vunpack.c.l.b16 %v833
    %v1409 = vunpack.c.l.b16 %v834
    %v1410 = vunpack.c.l.b16 %v835
    %v1411 = vunpack.c.l.b16 %v836
    %v1412 = vunpack.c.l.b16 %v837
    %v1413 = vunpack.c.l.b16 %v838
    %v1414 = vunpack.c.l.b16 %v839
    %v1415 = vunpack.c.l.b16 %v840
    %v1416 = vunpack.c.l.b16 %v841
    %v1417 = vunpack.c.l.b16 %v842
    %v1418 = vunpack.c.l.b16 %v843
    %v1419 = vunpack.c.l.b16 %v844
    %v1420 = vunpack.c.l.b16 %v845
    %v1421 = vunpack.c.l.b16 %v846
    %v1422 = vunpack.c.l.b16 %v847
    %v1423 = vunpack.c.l.b16 %v848
    %v1424 = vunpack.c.l.b16 %v849
    %v1425 = vunpack.c.l.b16 %v850
    %v1426 = vunpack.c.l.b16 %v851
    %v1427 = vunpack.c.l.b16 %v852
    %v1428 = vunpack.c.l.b16 %v853
    %v1429 = vunpack.c.l.b16 %v854
    %v1430 = vunpack.c.l.b16 %v855
    %v1431 = vunpack.c.l.b16 %v856
    %v1432 = vunpack.c.l.b16 %v857
    %v1433 = vunpack.c.l.b16 %v858
    %v1434 = vunpack.c.l.b16 %v859
    %v1435 = vunpack.c.l.b16 %v860
    %v1436 = vunpack.c.l.b16 %v861
    %v1437 = vunpack.c.l.b16 %v862
    %v1438 = vunpack.c.l.b16 %v863
    %v1439 = vunpack.c.l.b16 %v864
    %v1440 = vunpack.c.l.b16 %v865
    %v1441 = vunpack.c.l.b16 %v866
    %v1442 = vunpack.c.l.b16 %v867
    %v1443 = vunpack.c.l.b16 %v868
    %v1444 = vunpack.c.l.b16 %v869
    %v1445 = vunpack.c.l.b16 %v870
    %v1446 = vunpack.c.l.b16 %v871
    %v1447 = vunpack.c.l.b16 %v872
    %v1448 = vunpack.c.l.b16 %v873
    %v1449 = vunpack.c.l.b16 %v874
    %v1450 = vunpack.c.l.b16 %v875
    %v1451 = vunpack.c.l.b16 %v876
    %v1452 = vunpack.c.l.b16 %v877
    %v1453 = vunpack.c.l.b16 %v878
    %v1454 = vunpack.c.l.b16 %v879
    %v1455 = vunpack.c.l.b16 %v880
    %v1456 = vunpack.c.l.b16 %v881
    %v1457 = vunpack.c.l.b16 %v882
    %v1458 = vunpack.c.l.b16 %v883
    %v1459 = vunpack.c.l.b16 %v884
    %v1460 = vunpack.c.l.b16 %v885
    %v1461 = vunpack.c.l.b16 %v886
    %v1462 = vunpack.c.l.b16 %v887
    %v1463 = vunpack.c.l.b16 %v888
    %v1464 = vunpack.c.l.b16 %v889
    %v1465 = vunpack.c.l.b16 %v890
    %v1466 = vunpack.c.l.b16 %v891
    %v1467 = vunpack.c.l.b16 %v892
    %v1468 = vunpack.c.l.b16 %v893
    %v1469 = vunpack.c.l.b16 %v894
    %v1470 = vunpack.c.l.b16 %v895
    %v1471 = vunpack.c.l.b16 %v896
    %v1472 = vunpack.c.l.b16 %v897
    %v1473 = vunpack.c.l.b16 %v898
    %v1474 = vunpack.c.l.b16 %v899
    %v1475 = vunpack.c.l.b16 %v900
    %v1476 = vunpack.c.l.b16 %v901
    %v1477 = vunpack.c.l.b16 %v902
    %v1478 = vunpack.c.l.b16 %v903
    %v1479 = vunpack.c.l.b16 %v904
    %v1480 = vunpack.c.l.b16 %v905
    %v1481 = vunpack.c.l.b16 %v906
    %v1482 = vunpack.c.l.b16 %v907
    %v1483 = vunpack.c.l.b16 %v908
    %v1484 = vunpack.c.l.b16 %v909
    %v1485 = vunpack.c.l.b16 %v910
    %v1486 = vunpack.c.l.b16 %v911
    %v1487 = vunpack.c.l.b16 %v912
    %v1488 = vunpack.c.l.b16 %v913
    %v1489 = vunpack.c.l.b16 %v914
    %v1490 = vunpack.c.l.b16 %v915
    %v1491 = vunpack.c.l.b16 %v916
    %v1492 = vunpack.c.l.b16 %v917
    %v1493 = vunpack.c.l.b16 %v918
    %v1494 = vunpack.c.l.b16 %v919
    %v1495 = vunpack.c.l.b16 %v920
    %v1496 = vunpack.c.l.b16 %v921
    %v1497 = vunpack.c.l.b16 %v922
    %v1498 = vunpack.c.l.b16 %v923
    %v1499 = vunpack.c.l.b16 %v924
    %v1500 = vunpack.c.l.b16 %v925
    %v1501 = vunpack.c.l.b16 %v926
    %v1502 = vunpack.c.l.b16 %v927
    %v1503 = vunpack.c.l.b16 %v928
    %v1504 = vunpack.c.l.b16 %v929
    %v1505 = vunpack.c.l.b16 %v930
    %v1506 = vunpack.c.l.b16 %v931
    %v1507 = vunpack.c.l.b16 %v932
    %v1508 = vunpack.c.l.b16 %v933
    %v1509 = vunpack.c.l.b16 %v934
    %v1510 = vunpack.c.l.b16 %v935
    %v1511 = vunpack.c.l.b16 %v936
    %v1512 = vunpack.c.l.b16 %v937
    %v1513 = vunpack.c.l.b16 %v938
    %v1514 = vunpack.c.l.b16 %v939
    %v1515 = vunpack.c.l.b16 %v940
    %v1516 = vunpack.c.l.b16 %v941
    %v1517 = vunpack.c.l.b16 %v942
    %v1518 = vunpack.c.l.b16 %v943
    %v1519 = vunpack.c.l.b16 %v944
    %v1520 = vunpack.c.l.b16 %v945
    %v1521 = vunpack.c.l.b16 %v946
    %v1522 = vunpack.c.l.b16 %v947
    %v1523 = vunpack.c.l.b16 %v948
    %v1524 = vunpack.c.l.b16 %v949
    %v1525 = vunpack.c.l.b16 %v950
    %v1526 = vunpack.c.l.b16 %v951
    %v1527 = vunpack.c.l.b16 %v952
    %v1528 = vunpack.c.l.b16 %v953
    %v1529 = vunpack.c.l.b16 %v954
    %v1530 = vunpack.c.l.b16 %v955
    %v1531 = vunpack.c.l.b16 %v956
    %v1532 = vunpack.c.l.b16 %v957
    %v1533 = vunpack.c.l.b16 %v958
    %v1534 = vunpack.c.l.b16 %v959
    %v1535 = vunpack.c.l.b16 %v960
    %v1536 = vunpack.c.l.b16 %v961
    %v1537 = vunpack.c.l.b16 %v962
    %v1538 = vunpack.c.l.b16 %v963
    %v1539 = vunpack.c.l.b16 %v964
    %v1540 = vunpack.c.l.b16 %v965
    %v1541 = vunpack.c.l.b16 %v966
    %v1542 = vunpack.c.l.b16 %v967
    %v1543 = vunpack.c.l.b16 %v968
    %v1544 = vunpack.c.l.b16 %v969
    %v1545 = vunpack.c.l.b16 %v970
    %v1546 = vunpack.c.l.b16 %v971
    %v1547 = vunpack.c.l.b16 %v972
    %v1548 = vunpack.c.l.b16 %v973
    %v1549 = vunpack.c.l.b16 %v974
    %v1550 = vunpack.c.l.b16 %v975
    %v1551 = vunpack.c.l.b16 %v976
    %v1552 = vunpack.c.l.b16 %v977
    %v1553 = vunpack.c.l.b16 %v978
    %v1554 = vunpack.c.l.b16 %v979
    %v1555 = vunpack.c.l.b16 %v980
    %v1556 = vunpack.c.l.b16 %v981
    %v1557 = vunpack.c.l.b16 %v982
    %v1558 = vunpack.c.l.b16 %v983
    %v1559 = vunpack.c.l.b16 %v984
    %v1560 = vunpack.c.l.b16 %v985
    %v1561 = vunpack.c.l.b16 %v986
    %v1562 = vunpack.c.l.b16 %v987
    %v1563 = vunpack.c.l.b16 %v988
    %v1564 = vunpack.c.l.b16 %v989
    %v1565 = vunpack.c.l.b16 %v990
    %v1566 = vunpack.c.l.b16 %v991
    %v1567 = vunpack.c.l.b16 %v992
    %v1568 = vunpack.c.l.b16 %v993
    %v1569 = vunpack.c.l.b16 %v994
    %v1570 = vunpack.c.l.b16 %v995
    %v1571 = vunpack.c.l.b16 %v996
    %v1572 = vunpack.c.l.b16 %v997
    %v1573 = vunpack.c.l.b16 %v998
    %v1574 = vunpack.c.l.b16 %v999
    %v1575 = vunpack.c.l.b16 %v1000
    %v1576 = vunpack.c.l.b16 %v1001
    %v1577 = vunpack.c.l.b16 %v1002
    %v1578 = vunpack.c.l.b16 %v1003
    %v1579 = vunpack.c.l.b16 %v1004
    %v1580 = vunpack.c.l.b16 %v1005
    %v1581 = vunpack.c.l.b16 %v1006
    %v1582 = vunpack.c.l.b16 %v1007
    %v1583 = vunpack.c.l.b16 %v1008
    %v1584 = vunpack.c.l.b16 %v1009
    %v1585 = vpack.c.b16 %v1330, %v1329
    %v1586 = vpack.c.b16 %v1332, %v1331
    %v1587 = vpack.c.b16 %v1334, %v1333
    %v1588 = vpack.c.b16 %v1336, %v1335
    %v1589 = vpack.c.b16 %v1338, %v1337
    %v1590 = vpack.c.b16 %v1340, %v1339
    %v1591 = vpack.c.b16 %v1342, %v1341
    %v1592 = vpack.c.b16 %v1344, %v1343
    %v1593 = vpack.c.b16 %v1346, %v1345
    %v1594 = vpack.c.b16 %v1348, %v1347
    %v1595 = vpack.c.b16 %v1350, %v1349
    %v1596 = vpack.c.b16 %v1352, %v1351
    %v1597 = vpack.c.b16 %v1354, %v1353
    %v1598 = vpack.c.b16 %v1356, %v1355
    %v1599 = vpack.c.b16 %v1358, %v1357
    %v1600 = vpack.c.b16 %v1360, %v1359
    %v1601 = vpack.c.b16 %v1362, %v1361
    %v1602 = vpack.c.b16 %v1364, %v1363
    %v1603 = vpack.c.b16 %v1366, %v1365
    %v1604 = vpack.c.b16 %v1368, %v1367
    %v1605 = vpack.c.b16 %v1370, %v1369
    %v1606 = vpack.c.b16 %v1372, %v1371
    %v1607 = vpack.c.b16 %v1374, %v1373
    %v1608 = vpack.c.b16 %v1376, %v1375
    %v1609 = vpack.c.b16 %v1378, %v1377
    %v1610 = vpack.c.b16 %v1380, %v1379
    %v1611 = vpack.c.b16 %v1382, %v1381
    %v1612 = vpack.c.b16 %v1384, %v1383
    %v1613 = vpack.c.b16 %v1386, %v1385
    %v1614 = vpack.c.b16 %v1388, %v1387
    %v1615 = vpack.c.b16 %v1390, %v1389
    %v1616 = vpack.c.b16 %v1392, %v1391
    %v1617 = vpack.c.b16 %v1394, %v1393
    %v1618 = vpack.c.b16 %v1396, %v1395
    %v1619 = vpack.c.b16 %v1398, %v1397
    %v1620 = vpack.c.b16 %v1400, %v1399
    %v1621 = vpack.c.b16 %v1402, %v1401
    %v1622 = vpack.c.b16 %v1404, %v1403
    %v1623 = vpack.c.b16 %v1406, %v1405
    %v1624 = vpack.c.b16 %v1408, %v1407
    %v1625 = vpack.c.b16 %v1410, %v1409
    %v1626 = vpack.c.b16 %v1412, %v1411
    %v1627 = vpack.c.b16 %v1414, %v1413
    %v1628 = vpack.c.b16 %v1416, %v1415
    %v1629 = vpack.c.b16 %v1418, %v1417
    %v1630 = vpack.c.b16 %v1420, %v1419
    %v1631 = vpack.c.b16 %v1422, %v1421
    %v1632 = vpack.c.b16 %v1424, %v1423
    %v1633 = vpack.c.b16 %v1426, %v1425
    %v1634 = vpack.c.b16 %v1428, %v1427
    %v1635 = vpack.c.b16 %v1430, %v1429
    %v1636 = vpack.c.b16 %v1432, %v1431
    %v1637 = vpack.c.b16 %v1434, %v1433
    %v1638 = vpack.c.b16 %v1436, %v1435
    %v1639 = vpack.c.b16 %v1438, %v1437
    %v1640 = vpack.c.b16 %v1440, %v1439
    %v1641 = vpack.c.b16 %v1442, %v1441
    %v1642 = vpack.c.b16 %v1444, %v1443
    %v1643 = vpack.c.b16 %v1446, %v1445
    %v1644 = vpack.c.b16 %v1448, %v1447
    %v1645 = vpack.c.b16 %v1450, %v1449
    %v1646 = vpack.c.b16 %v1452, %v1451
    %v1647 = vpack.c.b16 %v1454, %v1453
    %v1648 = vpack.c.b16 %v1456, %v1455
    %v1649 = vpack.c.b16 %v1458, %v1457
    %v1650 = vpack.c.b16 %v1460, %v1459
    %v1651 = vpack.c.b16 %v1462, %v1461
    %v1652 = vpack.c.b16 %v1464, %v1463
    %v1653 = vpack.c.b16 %v1466, %v1465
    %v1654 = vpack.c.b16 %v1468, %v1467
    %v1655 = vpack.c.b16 %v1470, %v1469
    %v1656 = vpack.c.b16 %v1472, %v1471
    %v1657 = vpack.c.b16 %v1474, %v1473
    %v1658 = vpack.c.b16 %v1476, %v1475
    %v1659 = vpack.c.b16 %v1478, %v1477
    %v1660 = vpack.c.b16 %v1480, %v1479
    %v1661 = vpack.c.b16 %v1482, %v1481
    %v1662 = vpack.c.b16 %v1484, %v1483
    %v1663 = vpack.c.b16 %v1486, %v1485
    %v1664 = vpack.c.b16 %v1488, %v1487
    %v1665 = vpack.c.b16 %v1490, %v1489
    %v1666 = vpack.c.b16 %v1492, %v1491
    %v1667 = vpack.c.b16 %v1494, %v1493
    %v1668 = vpack.c.b16 %v1496, %v1495
    %v1669 = vpack.c.b16 %v1498, %v1497
    %v1670 = vpack.c.b16 %v1500, %v1499
    %v1671 = vpack.c.b16 %v1502, %v1501
    %v1672 = vpack.c.b16 %v1504, %v1503
    %v1673 = vpack.c.b16 %v1506, %v1505
    %v1674 = vpack.c.b16 %v1508, %v1507
    %v1675 = vpack.c.b16 %v1510, %v1509
    %v1676 = vpack.c.b16 %v1512, %v1511
    %v1677 = vpack.c.b16 %v1514, %v1513
    %v1678 = vpack.c.b16 %v1516, %v1515
    %v1679 = vpack.c.b16 %v1518, %v1517
    %v1680 = vpack.c.b16 %v1520, %v1519
    %v1681 = vpack.c.b16 %v1522, %v1521
    %v1682 = vpack.c.b16 %v1524, %v1523
    %v1683 = vpack.c.b16 %v1526, %v1525
    %v1684 = vpack.c.b16 %v1528, %v1527
    %v1685 = vpack.c.b16 %v1530, %v1529
    %v1686 = vpack.c.b16 %v1532, %v1531
    %v1687 = vpack.c.b16 %v1534, %v1533
    %v1688 = vpack.c.b16 %v1536, %v1535
    %v1689 = vpack.c.b16 %v1538, %v1537
    %v1690 = vpack.c.b16 %v1540, %v1539
    %v1691 = vpack.c.b16 %v1542, %v1541
    %v1692 = vpack.c.b16 %v1544, %v1543
    %v1693 = vpack.c.b16 %v1546, %v1545
    %v1694 = vpack.c.b16 %v1548, %v1547
    %v1695 = vpack.c.b16 %v1550, %v1549
    %v1696 = vpack.c.b16 %v1552, %v1551
    %v1697 = vpack.c.b16 %v1554, %v1553
    %v1698 = vpack.c.b16 %v1556, %v1555
    %v1699 = vpack.c.b16 %v1558, %v1557
    %v1700 = vpack.c.b16 %v1560, %v1559
    %v1701 = vpack.c.b16 %v1562, %v1561
    %v1702 = vpack.c.b16 %v1564, %v1563
    %v1703 = vpack.c.b16 %v1566, %v1565
    %v1704 = vpack.c.b16 %v1568, %v1567
    %v1705 = vpack.c.b16 %v1570, %v1569
    %v1706 = vpack.c.b16 %v1572, %v1571
    %v1707 = vpack.c.b16 %v1574, %v1573
    %v1708 = vpack.c.b16 %v1576, %v1575
    %v1709 = vpack.c.b16 %v1578, %v1577
    %v1710 = vpack.c.b16 %v1580, %v1579
    %v1711 = vpack.c.b16 %v1582, %v1581
    %v1712 = vpack.c.b16 %v1584, %v1583
    %1841 = vmatprep.subr.bf16.mxu0 0
    %1842 = vmatpush1.bf16.msra.mxu0 %v1585
    %1843 = vmatprep.subr.bf16.mxu0 0
    %1844 = vmatpush1.bf16.msra.mxu0 %v1586
    %1845 = vmatprep.subr.bf16.mxu0 0
    %1846 = vmatpush1.bf16.msra.mxu0 %v1587
    %1847 = vmatprep.subr.bf16.mxu0 0
    %1848 = vmatpush1.bf16.msra.mxu0 %v1588
    %1849 = vmatprep.subr.bf16.mxu0 0
    %1850 = vmatpush1.bf16.msra.mxu0 %v1589
    %1851 = vmatprep.subr.bf16.mxu0 0
    %1852 = vmatpush1.bf16.msra.mxu0 %v1590
    %1853 = vmatprep.subr.bf16.mxu0 0
    %1854 = vmatpush1.bf16.msra.mxu0 %v1591
    %1855 = vmatprep.subr.bf16.mxu0 0
    %1856 = vmatpush1.bf16.msra.mxu0 %v1592
    %1857 = vmatprep.subr.bf16.mxu0 0
    %1858 = vmatpush1.bf16.msra.mxu0 %v1593
    %1859 = vmatprep.subr.bf16.mxu0 0
    %1860 = vmatpush1.bf16.msra.mxu0 %v1594
    %1861 = vmatprep.subr.bf16.mxu0 0
    %1862 = vmatpush1.bf16.msra.mxu0 %v1595
    %1863 = vmatprep.subr.bf16.mxu0 0
    %1864 = vmatpush1.bf16.msra.mxu0 %v1596
    %1865 = vmatprep.subr.bf16.mxu0 0
    %1866 = vmatpush1.bf16.msra.mxu0 %v1597
    %1867 = vmatprep.subr.bf16.mxu0 0
    %1868 = vmatpush1.bf16.msra.mxu0 %v1598
    %1869 = vmatprep.subr.bf16.mxu0 0
    %1870 = vmatpush1.bf16.msra.mxu0 %v1599
    %1871 = vmatprep.subr.bf16.mxu0 0
    %1872 = vmatpush1.bf16.msra.mxu0 %v1600
    %1873 = vmatprep.mubr.bf16.mxu0 %v1042
    %1874 = vmatmul.mubr.bf16.gmra.mrb[0].mxu0 %v1041
    %v1875 = vpop.f32.mrb[0].mxu0
    %v1876 = vadd.f32 %v1015, %v1875
    %v1877 = vpop.f32.mrb[0].mxu0
    %v1878 = vpop.f32.mrb[0].mxu0
    %v1879 = vpop.f32.mrb[0].mxu0
    %1880 = vdwg.mxu0
    %1881 = vmatprep.subr.bf16.mxu0 0
    %1882 = vmatpush1.bf16.msra.mxu0 %v1601
    %1883 = vmatprep.subr.bf16.mxu0 0
    %1884 = vmatpush1.bf16.msra.mxu0 %v1602
    %1885 = vmatprep.subr.bf16.mxu0 0
    %1886 = vmatpush1.bf16.msra.mxu0 %v1603
    %1887 = vmatprep.subr.bf16.mxu0 0
    %1888 = vmatpush1.bf16.msra.mxu0 %v1604
    %1889 = vmatprep.subr.bf16.mxu0 0
    %1890 = vmatpush1.bf16.msra.mxu0 %v1605
    %1891 = vmatprep.subr.bf16.mxu0 0
    %1892 = vmatpush1.bf16.msra.mxu0 %v1606
    %1893 = vmatprep.subr.bf16.mxu0 0
    %1894 = vmatpush1.bf16.msra.mxu0 %v1607
    %1895 = vmatprep.subr.bf16.mxu0 0
    %1896 = vmatpush1.bf16.msra.mxu0 %v1608
    %1897 = vmatprep.subr.bf16.mxu0 0
    %1898 = vmatpush1.bf16.msra.mxu0 %v1609
    %1899 = vmatprep.subr.bf16.mxu0 0
    %1900 = vmatpush1.bf16.msra.mxu0 %v1610
    %1901 = vmatprep.subr.bf16.mxu0 0
    %1902 = vmatpush1.bf16.msra.mxu0 %v1611
    %1903 = vmatprep.subr.bf16.mxu0 0
    %1904 = vmatpush1.bf16.msra.mxu0 %v1612
    %1905 = vmatprep.subr.bf16.mxu0 0
    %1906 = vmatpush1.bf16.msra.mxu0 %v1613
    %1907 = vmatprep.subr.bf16.mxu0 0
    %1908 = vmatpush1.bf16.msra.mxu0 %v1614
    %1909 = vmatprep.subr.bf16.mxu0 0
    %1910 = vmatpush1.bf16.msra.mxu0 %v1615
    %1911 = vmatprep.subr.bf16.mxu0 0
    %1912 = vmatpush1.bf16.msra.mxu0 %v1616
    %1913 = vmatprep.mubr.bf16.mxu0 %v1044
    %1914 = vmatmul.mubr.bf16.gmra.mrb[0].mxu0 %v1043
    %v1915 = vpop.f32.mrb[0].mxu0
    %v1916 = vadd.f32 %v1876, %v1915
    %v1917 = vpop.f32.mrb[0].mxu0
    %v1918 = vpop.f32.mrb[0].mxu0
    %v1919 = vpop.f32.mrb[0].mxu0
    %1920 = vdwg.mxu0
    %1921 = vmatprep.subr.bf16.mxu0 0
    %1922 = vmatpush1.bf16.msra.mxu0 %v1617
    %1923 = vmatprep.subr.bf16.mxu0 0
    %1924 = vmatpush1.bf16.msra.mxu0 %v1618
    %1925 = vmatprep.subr.bf16.mxu0 0
    %1926 = vmatpush1.bf16.msra.mxu0 %v1619
    %1927 = vmatprep.subr.bf16.mxu0 0
    %1928 = vmatpush1.bf16.msra.mxu0 %v1620
    %1929 = vmatprep.subr.bf16.mxu0 0
    %1930 = vmatpush1.bf16.msra.mxu0 %v1621
    %1931 = vmatprep.subr.bf16.mxu0 0
    %1932 = vmatpush1.bf16.msra.mxu0 %v1622
    %1933 = vmatprep.subr.bf16.mxu0 0
    %1934 = vmatpush1.bf16.msra.mxu0 %v1623
    %1935 = vmatprep.subr.bf16.mxu0 0
    %1936 = vmatpush1.bf16.msra.mxu0 %v1624
    %1937 = vmatprep.subr.bf16.mxu0 0
    %1938 = vmatpush1.bf16.msra.mxu0 %v1625
    %1939 = vmatprep.subr.bf16.mxu0 0
    %1940 = vmatpush1.bf16.msra.mxu0 %v1626
    %1941 = vmatprep.subr.bf16.mxu0 0
    %1942 = vmatpush1.bf16.msra.mxu0 %v1627
    %1943 = vmatprep.subr.bf16.mxu0 0
    %1944 = vmatpush1.bf16.msra.mxu0 %v1628
    %1945 = vmatprep.subr.bf16.mxu0 0
    %1946 = vmatpush1.bf16.msra.mxu0 %v1629
    %1947 = vmatprep.subr.bf16.mxu0 0
    %1948 = vmatpush1.bf16.msra.mxu0 %v1630
    %1949 = vmatprep.subr.bf16.mxu0 0
    %1950 = vmatpush1.bf16.msra.mxu0 %v1631
    %1951 = vmatprep.subr.bf16.mxu0 0
    %1952 = vmatpush1.bf16.msra.mxu0 %v1632
    %1953 = vmatprep.mubr.bf16.mxu0 %v1046
    %1954 = vmatmul.mubr.bf16.gmra.mrb[0].mxu0 %v1045
    %v1955 = vpop.f32.mrb[0].mxu0
    %v1956 = vadd.f32 %v1916, %v1955
    %v1957 = vpop.f32.mrb[0].mxu0
    %v1958 = vpop.f32.mrb[0].mxu0
    %v1959 = vpop.f32.mrb[0].mxu0
    %1960 = vdwg.mxu0
    %1961 = vmatprep.subr.bf16.mxu0 0
    %1962 = vmatpush1.bf16.msra.mxu0 %v1633
    %1963 = vmatprep.subr.bf16.mxu0 0
    %1964 = vmatpush1.bf16.msra.mxu0 %v1634
    %1965 = vmatprep.subr.bf16.mxu0 0
    %1966 = vmatpush1.bf16.msra.mxu0 %v1635
    %1967 = vmatprep.subr.bf16.mxu0 0
    %1968 = vmatpush1.bf16.msra.mxu0 %v1636
    %1969 = vmatprep.subr.bf16.mxu0 0
    %1970 = vmatpush1.bf16.msra.mxu0 %v1637
    %1971 = vmatprep.subr.bf16.mxu0 0
    %1972 = vmatpush1.bf16.msra.mxu0 %v1638
    %1973 = vmatprep.subr.bf16.mxu0 0
    %1974 = vmatpush1.bf16.msra.mxu0 %v1639
    %1975 = vmatprep.subr.bf16.mxu0 0
    %1976 = vmatpush1.bf16.msra.mxu0 %v1640
    %1977 = vmatprep.subr.bf16.mxu0 0
    %1978 = vmatpush1.bf16.msra.mxu0 %v1641
    %1979 = vmatprep.subr.bf16.mxu0 0
    %1980 = vmatpush1.bf16.msra.mxu0 %v1642
    %1981 = vmatprep.subr.bf16.mxu0 0
    %1982 = vmatpush1.bf16.msra.mxu0 %v1643
    %1983 = vmatprep.subr.bf16.mxu0 0
    %1984 = vmatpush1.bf16.msra.mxu0 %v1644
    %1985 = vmatprep.subr.bf16.mxu0 0
    %1986 = vmatpush1.bf16.msra.mxu0 %v1645
    %1987 = vmatprep.subr.bf16.mxu0 0
    %1988 = vmatpush1.bf16.msra.mxu0 %v1646
    %1989 = vmatprep.subr.bf16.mxu0 0
    %1990 = vmatpush1.bf16.msra.mxu0 %v1647
    %1991 = vmatprep.subr.bf16.mxu0 0
    %1992 = vmatpush1.bf16.msra.mxu0 %v1648
    %1993 = vmatprep.mubr.bf16.mxu0 %v1048
    %1994 = vmatmul.mubr.bf16.gmra.mrb[0].mxu0 %v1047
    %v1995 = vpop.f32.mrb[0].mxu0
    %v1996 = vadd.f32 %v1956, %v1995
    %v1997 = vpop.f32.mrb[0].mxu0
    %v1998 = vpop.f32.mrb[0].mxu0
    %v1999 = vpop.f32.mrb[0].mxu0
    %2000 = vdwg.mxu0
    %2001 = vmatprep.subr.bf16.mxu0 0
    %2002 = vmatpush1.bf16.msra.mxu0 %v1649
    %2003 = vmatprep.subr.bf16.mxu0 0
    %2004 = vmatpush1.bf16.msra.mxu0 %v1650
    %2005 = vmatprep.subr.bf16.mxu0 0
    %2006 = vmatpush1.bf16.msra.mxu0 %v1651
    %2007 = vmatprep.subr.bf16.mxu0 0
    %2008 = vmatpush1.bf16.msra.mxu0 %v1652
    %2009 = vmatprep.subr.bf16.mxu0 0
    %2010 = vmatpush1.bf16.msra.mxu0 %v1653
    %2011 = vmatprep.subr.bf16.mxu0 0
    %2012 = vmatpush1.bf16.msra.mxu0 %v1654
    %2013 = vmatprep.subr.bf16.mxu0 0
    %2014 = vmatpush1.bf16.msra.mxu0 %v1655
    %2015 = vmatprep.subr.bf16.mxu0 0
    %2016 = vmatpush1.bf16.msra.mxu0 %v1656
    %2017 = vmatprep.subr.bf16.mxu0 0
    %2018 = vmatpush1.bf16.msra.mxu0 %v1657
    %2019 = vmatprep.subr.bf16.mxu0 0
    %2020 = vmatpush1.bf16.msra.mxu0 %v1658
    %2021 = vmatprep.subr.bf16.mxu0 0
    %2022 = vmatpush1.bf16.msra.mxu0 %v1659
    %2023 = vmatprep.subr.bf16.mxu0 0
    %2024 = vmatpush1.bf16.msra.mxu0 %v1660
    %2025 = vmatprep.subr.bf16.mxu0 0
    %2026 = vmatpush1.bf16.msra.mxu0 %v1661
    %2027 = vmatprep.subr.bf16.mxu0 0
    %2028 = vmatpush1.bf16.msra.mxu0 %v1662
    %2029 = vmatprep.subr.bf16.mxu0 0
    %2030 = vmatpush1.bf16.msra.mxu0 %v1663
    %2031 = vmatprep.subr.bf16.mxu0 0
    %2032 = vmatpush1.bf16.msra.mxu0 %v1664
    %2033 = vmatprep.mubr.bf16.mxu0 %v1050
    %2034 = vmatmul.mubr.bf16.gmra.mrb[0].mxu0 %v1049
    %v2035 = vpop.f32.mrb[0].mxu0
    %v2036 = vadd.f32 %v1996, %v2035
    %v2037 = vpop.f32.mrb[0].mxu0
    %v2038 = vpop.f32.mrb[0].mxu0
    %v2039 = vpop.f32.mrb[0].mxu0
    %2040 = vdwg.mxu0
    %2041 = vmatprep.subr.bf16.mxu0 0
    %2042 = vmatpush1.bf16.msra.mxu0 %v1665
    %2043 = vmatprep.subr.bf16.mxu0 0
    %2044 = vmatpush1.bf16.msra.mxu0 %v1666
    %2045 = vmatprep.subr.bf16.mxu0 0
    %2046 = vmatpush1.bf16.msra.mxu0 %v1667
    %2047 = vmatprep.subr.bf16.mxu0 0
    %2048 = vmatpush1.bf16.msra.mxu0 %v1668
    %2049 = vmatprep.subr.bf16.mxu0 0
    %2050 = vmatpush1.bf16.msra.mxu0 %v1669
    %2051 = vmatprep.subr.bf16.mxu0 0
    %2052 = vmatpush1.bf16.msra.mxu0 %v1670
    %2053 = vmatprep.subr.bf16.mxu0 0
    %2054 = vmatpush1.bf16.msra.mxu0 %v1671
    %2055 = vmatprep.subr.bf16.mxu0 0
    %2056 = vmatpush1.bf16.msra.mxu0 %v1672
    %2057 = vmatprep.subr.bf16.mxu0 0
    %2058 = vmatpush1.bf16.msra.mxu0 %v1673
    %2059 = vmatprep.subr.bf16.mxu0 0
    %2060 = vmatpush1.bf16.msra.mxu0 %v1674
    %2061 = vmatprep.subr.bf16.mxu0 0
    %2062 = vmatpush1.bf16.msra.mxu0 %v1675
    %2063 = vmatprep.subr.bf16.mxu0 0
    %2064 = vmatpush1.bf16.msra.mxu0 %v1676
    %2065 = vmatprep.subr.bf16.mxu0 0
    %2066 = vmatpush1.bf16.msra.mxu0 %v1677
    %2067 = vmatprep.subr.bf16.mxu0 0
    %2068 = vmatpush1.bf16.msra.mxu0 %v1678
    %2069 = vmatprep.subr.bf16.mxu0 0
    %2070 = vmatpush1.bf16.msra.mxu0 %v1679
    %2071 = vmatprep.subr.bf16.mxu0 0
    %2072 = vmatpush1.bf16.msra.mxu0 %v1680
    %2073 = vmatprep.mubr.bf16.mxu0 %v1052
    %2074 = vmatmul.mubr.bf16.gmra.mrb[0].mxu0 %v1051
    %v2075 = vpop.f32.mrb[0].mxu0
    %v2076 = vadd.f32 %v2036, %v2075
    %v2077 = vpop.f32.mrb[0].mxu0
    %v2078 = vpop.f32.mrb[0].mxu0
    %v2079 = vpop.f32.mrb[0].mxu0
    %2080 = vdwg.mxu0
    %2081 = vmatprep.subr.bf16.mxu0 0
    %2082 = vmatpush1.bf16.msra.mxu0 %v1681
    %2083 = vmatprep.subr.bf16.mxu0 0
    %2084 = vmatpush1.bf16.msra.mxu0 %v1682
    %2085 = vmatprep.subr.bf16.mxu0 0
    %2086 = vmatpush1.bf16.msra.mxu0 %v1683
    %2087 = vmatprep.subr.bf16.mxu0 0
    %2088 = vmatpush1.bf16.msra.mxu0 %v1684
    %2089 = vmatprep.subr.bf16.mxu0 0
    %2090 = vmatpush1.bf16.msra.mxu0 %v1685
    %2091 = vmatprep.subr.bf16.mxu0 0
    %2092 = vmatpush1.bf16.msra.mxu0 %v1686
    %2093 = vmatprep.subr.bf16.mxu0 0
    %2094 = vmatpush1.bf16.msra.mxu0 %v1687
    %2095 = vmatprep.subr.bf16.mxu0 0
    %2096 = vmatpush1.bf16.msra.mxu0 %v1688
    %2097 = vmatprep.subr.bf16.mxu0 0
    %2098 = vmatpush1.bf16.msra.mxu0 %v1689
    %2099 = vmatprep.subr.bf16.mxu0 0
    %2100 = vmatpush1.bf16.msra.mxu0 %v1690
    %2101 = vmatprep.subr.bf16.mxu0 0
    %2102 = vmatpush1.bf16.msra.mxu0 %v1691
    %2103 = vmatprep.subr.bf16.mxu0 0
    %2104 = vmatpush1.bf16.msra.mxu0 %v1692
    %2105 = vmatprep.subr.bf16.mxu0 0
    %2106 = vmatpush1.bf16.msra.mxu0 %v1693
    %2107 = vmatprep.subr.bf16.mxu0 0
    %2108 = vmatpush1.bf16.msra.mxu0 %v1694
    %2109 = vmatprep.subr.bf16.mxu0 0
    %2110 = vmatpush1.bf16.msra.mxu0 %v1695
    %2111 = vmatprep.subr.bf16.mxu0 0
    %2112 = vmatpush1.bf16.msra.mxu0 %v1696
    %2113 = vmatprep.mubr.bf16.mxu0 %v1054
    %2114 = vmatmul.mubr.bf16.gmra.mrb[0].mxu0 %v1053
    %v2115 = vpop.f32.mrb[0].mxu0
    %v2116 = vadd.f32 %v2076, %v2115
    %v2117 = vpop.f32.mrb[0].mxu0
    %v2118 = vpop.f32.mrb[0].mxu0
    %v2119 = vpop.f32.mrb[0].mxu0
    %2120 = vdwg.mxu0
    %2121 = vmatprep.subr.bf16.mxu0 0
    %2122 = vmatpush1.bf16.msra.mxu0 %v1697
    %2123 = vmatprep.subr.bf16.mxu0 0
    %2124 = vmatpush1.bf16.msra.mxu0 %v1698
    %2125 = vmatprep.subr.bf16.mxu0 0
    %2126 = vmatpush1.bf16.msra.mxu0 %v1699
    %2127 = vmatprep.subr.bf16.mxu0 0
    %2128 = vmatpush1.bf16.msra.mxu0 %v1700
    %2129 = vmatprep.subr.bf16.mxu0 0
    %2130 = vmatpush1.bf16.msra.mxu0 %v1701
    %2131 = vmatprep.subr.bf16.mxu0 0
    %2132 = vmatpush1.bf16.msra.mxu0 %v1702
    %2133 = vmatprep.subr.bf16.mxu0 0
    %2134 = vmatpush1.bf16.msra.mxu0 %v1703
    %2135 = vmatprep.subr.bf16.mxu0 0
    %2136 = vmatpush1.bf16.msra.mxu0 %v1704
    %2137 = vmatprep.subr.bf16.mxu0 0
    %2138 = vmatpush1.bf16.msra.mxu0 %v1705
    %2139 = vmatprep.subr.bf16.mxu0 0
    %2140 = vmatpush1.bf16.msra.mxu0 %v1706
    %2141 = vmatprep.subr.bf16.mxu0 0
    %2142 = vmatpush1.bf16.msra.mxu0 %v1707
    %2143 = vmatprep.subr.bf16.mxu0 0
    %2144 = vmatpush1.bf16.msra.mxu0 %v1708
    %2145 = vmatprep.subr.bf16.mxu0 0
    %2146 = vmatpush1.bf16.msra.mxu0 %v1709
    %2147 = vmatprep.subr.bf16.mxu0 0
    %2148 = vmatpush1.bf16.msra.mxu0 %v1710
    %2149 = vmatprep.subr.bf16.mxu0 0
    %2150 = vmatpush1.bf16.msra.mxu0 %v1711
    %2151 = vmatprep.subr.bf16.mxu0 0
    %2152 = vmatpush1.bf16.msra.mxu0 %v1712
    %2153 = vmatprep.mubr.bf16.mxu0 %v1056
    %2154 = vmatmul.mubr.bf16.gmra.mrb[0].mxu0 %v1055
    %v2155 = vpop.f32.mrb[0].mxu0
    %v2156 = vadd.f32 %v2116, %v2155
    %v2157 = vpop.f32.mrb[0].mxu0
    %v2158 = vpop.f32.mrb[0].mxu0
    %v2159 = vpop.f32.mrb[0].mxu0
    %2160 = vdwg.mxu0
    %2161 = vst [vmem:[#allocation3] sm:$0xff] %v2156
    %v2162 = vld [vmem:[#allocation3] sm:$0x3]
    %v2163 = vadd.f32 %v2162, 0.0
    %vm2164 = vcmp.ge.f32.partialorder %v2163, 1.0
    %v2165 = vsel %vm2164, 1, 0
    %v2166 = vcvt.s32.f32 %v2165
    %v2167 = vsub.f32 %v2163, %v2166
    %v2168 = vadd.f32 %v2166, 0.0
    %v2169 = vld [vmem:[#allocation3 + $0x2] sm:$0x3]
    %v2170 = vmul.f32 %v2167, 0.5
    %v2171 = vadd.f32 %v2170, %v2169
    %vm2172 = vcmp.ge.f32.partialorder %v2171, 1.0
    %v2173 = vsel %vm2172, 1, 0
    %v2174 = vcvt.s32.f32 %v2173
    %v2175 = vsub.f32 %v2171, %v2174
    %v2176 = vadd.f32 %v2168, %v2174
    %v2177 = vld [vmem:[#allocation3 + $0x4] sm:$0x3]
    %v2178 = vmul.f32 %v2175, 0.5
    %v2179 = vadd.f32 %v2178, %v2177
    %vm2180 = vcmp.ge.f32.partialorder %v2179, 1.0
    %v2181 = vsel %vm2180, 1, 0
    %v2182 = vcvt.s32.f32 %v2181
    %v2183 = vsub.f32 %v2179, %v2182
    %v2184 = vadd.f32 %v2176, %v2182
    %v2185 = vld [vmem:[#allocation3 + $0x6] sm:$0x3]
    %v2186 = vmul.f32 %v2183, 0.5
    %v2187 = vadd.f32 %v2186, %v2185
    %vm2188 = vcmp.ge.f32.partialorder %v2187, 1.0
    %v2189 = vsel %vm2188, 1, 0
    %v2190 = vcvt.s32.f32 %v2189
    %v2191 = vadd.f32 %v2184, %v2190
    %v2192 = vmul.f32 %v2191, 0.25
    %v2193 = vld [vmem:[%s3] sm:$0xff]
    %v2194 = vld [vmem:[%s3 + $0x8] sm:$0xff]
    %v2195 = vld [vmem:[%s3 + $0x10] sm:$0xff]
    %v2196 = vld [vmem:[%s3 + $0x18] sm:$0xff]
    %v2197 = vld [vmem:[%s3 + $0x20] sm:$0xff]
    %v2198 = vld [vmem:[%s3 + $0x28] sm:$0xff]
    %v2199 = vld [vmem:[%s3 + $0x30] sm:$0xff]
    %v2200 = vld [vmem:[%s3 + $0x38] sm:$0xff]
    %v2201 = vld [vmem:[%s3 + $0x40] sm:$0xff]
    %v2202 = vld [vmem:[%s3 + $0x48] sm:$0xff]
    %v2203 = vld [vmem:[%s3 + $0x50] sm:$0xff]
    %v2204 = vld [vmem:[%s3 + $0x58] sm:$0xff]
    %v2205 = vld [vmem:[%s3 + $0x60] sm:$0xff]
    %v2206 = vld [vmem:[%s3 + $0x68] sm:$0xff]
    %v2207 = vld [vmem:[%s3 + $0x70] sm:$0xff]
    %v2208 = vld [vmem:[%s3 + $0x78] sm:$0xff]
    %v2209 = vld [vmem:[%s4] sm:$0x1]
    %v2211 = vlaneseq
    %v2212 = vshrl.u32 %v2211, 7
    %v2213 = vsub.s32 0, %v2212
    %v2214 = vrot.slane %v2209, %v2213
    %2216 = vmatprep.subr.mxu0 0.0
    %2217 = vmatpush1.msra.mxu0 %v2193
    %2218 = vmatprep.subr.mxu0 0.0
    %2219 = vmatpush1.msra.mxu0 %v2194
    %2220 = vmatprep.subr.mxu0 0.0
    %2221 = vmatpush1.msra.mxu0 %v2195
    %2222 = vmatprep.subr.mxu0 0.0
    %2223 = vmatpush1.msra.mxu0 %v2196
    %2224 = vmatprep.subr.mxu0 0.0
    %2225 = vmatpush1.msra.mxu0 %v2197
    %2226 = vmatprep.subr.mxu0 0.0
    %2227 = vmatpush1.msra.mxu0 %v2198
    %2228 = vmatprep.subr.mxu0 0.0
    %2229 = vmatpush1.msra.mxu0 %v2199
    %2230 = vmatprep.subr.mxu0 0.0
    %2231 = vmatpush1.msra.mxu0 %v2200
    %2232 = vmatprep.subr.mxu0 0.0
    %2233 = vmatpush1.msra.mxu0 %v2201
    %2234 = vmatprep.subr.mxu0 0.0
    %2235 = vmatpush1.msra.mxu0 %v2202
    %2236 = vmatprep.subr.mxu0 0.0
    %2237 = vmatpush1.msra.mxu0 %v2203
    %2238 = vmatprep.subr.mxu0 0.0
    %2239 = vmatpush1.msra.mxu0 %v2204
    %2240 = vmatprep.subr.mxu0 0.0
    %2241 = vmatpush1.msra.mxu0 %v2205
    %2242 = vmatprep.subr.mxu0 0.0
    %2243 = vmatpush1.msra.mxu0 %v2206
    %2244 = vmatprep.subr.mxu0 0.0
    %2245 = vmatpush1.msra.mxu0 %v2207
    %2246 = vmatprep.subr.mxu0 0.0
    %2247 = vmatpush1.msra.mxu0 %v2208
    %2248 = vmatprep.subr.mxu0 0.0
    %2249 = vmatpush1.msra.mxu0 0.0
    %2250 = vmatprep.subr.mxu0 0.0
    %2251 = vmatpush1.msra.mxu0 0.0
    %2252 = vmatprep.subr.mxu0 0.0
    %2253 = vmatpush1.msra.mxu0 0.0
    %2254 = vmatprep.subr.mxu0 0.0
    %2255 = vmatpush1.msra.mxu0 0.0
    %2256 = vmatprep.subr.mxu0 0.0
    %2257 = vmatpush1.msra.mxu0 0.0
    %2258 = vmatprep.subr.mxu0 0.0
    %2259 = vmatpush1.msra.mxu0 0.0
    %2260 = vmatprep.subr.mxu0 0.0
    %2261 = vmatpush1.msra.mxu0 0.0
    %2262 = vmatprep.subr.mxu0 0.0
    %2263 = vmatpush1.msra.mxu0 0.0
    %2264 = vmatprep.subr.mxu0 0.0
    %2265 = vmatpush1.msra.mxu0 0.0
    %2266 = vmatprep.subr.mxu0 0.0
    %2267 = vmatpush1.msra.mxu0 0.0
    %2268 = vmatprep.subr.mxu0 0.0
    %2269 = vmatpush1.msra.mxu0 0.0
    %2270 = vmatprep.subr.mxu0 0.0
    %2271 = vmatpush1.msra.mxu0 0.0
    %2272 = vmatprep.subr.mxu0 0.0
    %2273 = vmatpush1.msra.mxu0 0.0
    %2274 = vmatprep.subr.mxu0 0.0
    %2275 = vmatpush1.msra.mxu0 0.0
    %2276 = vmatprep.subr.mxu0 0.0
    %2277 = vmatpush1.msra.mxu0 0.0
    %2278 = vmatprep.subr.mxu0 0.0
    %2279 = vmatpush1.msra.mxu0 0.0
    %2280 = vmatprep.mubr.f32.mxu0 0.0
    %2281 = vmatmul.mubr.f32.gmra.mrb[0].mxu0 %v2192
    %v2282 = vpop.f32.mrb[0].mxu0
    %v2283 = vadd.f32 %v2214, %v2282
    %v2284 = vpop.f32.mrb[0].mxu0
    %2285 = vdwg.mxu0
    %vm2286 = vcmask 74752
    %2287 = vst.msk [vmem:[#allocation4] sm:$0x3] %vm2286, %v2283
    // Predicated region
    $region22: #{a2s_forward.3} parent=1 // pred_check
      _
    $region23: #{a2s_forward.3} parent=1 // pred_check_branch
      %2289 = sbr.rel (0) target = $region25
    $region24: #{a2s_forward.3} parent=1 // pred_region
      %s2291 = ssub.s32 32, 32
      %2292 = vsyncadd [#allocation5], %s2291
      %s2294 = sshll.u32 [#allocation4], 4
      %s2295 = int_to_ptr.vmem [resolvable:$true] %s2294
      %2297 = dma.vmem_to_hbm [thread:$0]  %s2295, 32, %s5, [#allocation5]
    $region25: #{a2s_forward.3} parent=1 // pred_fallthru
      _
    // Predicated region
    $region26: #{a2s_forward.3} parent=1 // pred_check
      _
    $region27: #{a2s_forward.3} parent=1 // pred_check_branch
      %2299 = sbr.rel (0) target = $region29
    $region28: #{a2s_forward.3} parent=1 // pred_region
      %2300 = dma.done [#allocation5], 32
    $region29: #{a2s_forward.3} parent=1 // pred_fallthru
      _
    %2301 = vsyncpa [#allocation5], 1

</llo_original>
